<compile_context>
chip_gen: v6e
topology: v6e:2x2x1
jax: 0.10.0
libtpu: 0.0.40
codegen_flags: <defaults>
</compile_context>

<pallas_src>
import functools
import math

import jax
import jax.numpy as jnp
from jax.experimental import pallas as pl
from jax.experimental.pallas import tpu as pltpu


# ----------------------------------------------------------------------------
# Pallas kernels
# ----------------------------------------------------------------------------
def _encoder_layer_kernel(src_ref, pos_ref,
                          inpw_ref, inpb_ref, outw_ref, outb_ref,
                          w1_ref, b1_ref, w2_ref, b2_ref,
                          ln1g_ref, ln1b_ref, ln2g_ref, ln2b_ref,
                          flng_ref, flnb_ref,
                          out_ref, *, nhead, tq, nq, apply_final_ln):
    """One post-norm encoder layer for one batch element and one Q-row block."""
    S = src_ref.shape[1]
    D = src_ref.shape[2]
    dh = D // nhead
    scale = 1.0 / math.sqrt(dh)
    bf16 = jnp.bfloat16
    f32 = jnp.float32

    x_full = src_ref[0].astype(f32)          # (S, D)  value input / residual source
    p_full = pos_ref[0].astype(f32)          # (S, D)
    qk_full = x_full + p_full                # q = k = src + pos

    inpw = inpw_ref[...]                     # bf16 (D, 3D), layout (in, out)
    inpb = inpb_ref[...].astype(f32)         # f32  (1, 3D)

    if nq == 1:
        # Single Q block: fuse Q and K projections into one N=2D matmul.
        x_q = x_full                                                   # (tq, D)
        qk = jnp.dot(qk_full.astype(bf16), inpw[:, :2 * D],
                     preferred_element_type=f32) + inpb[:, :2 * D]
        q = qk[:, :D]
        k = qk[:, D:]
    else:
        qi = pl.program_id(1)
        qstart = pl.multiple_of(qi * tq, tq)
        x_q = src_ref[0, pl.ds(qstart, tq), :].astype(f32)             # (tq, D)
        p_q = pos_ref[0, pl.ds(qstart, tq), :].astype(f32)
        q = jnp.dot((x_q + p_q).astype(bf16), inpw[:, :D],
                    preferred_element_type=f32) + inpb[:, :D]
        k = jnp.dot(qk_full.astype(bf16), inpw[:, D:2 * D],
                    preferred_element_type=f32) + inpb[:, D:2 * D]
    v = jnp.dot(x_full.astype(bf16), inpw[:, 2 * D:],
                preferred_element_type=f32) + inpb[:, 2 * D:]

    # ---- batched multi-head attention (no per-head loop, no lane concat) ----
    qh = (q * scale).reshape(tq, nhead, dh).transpose(1, 0, 2).astype(bf16)
    kh = k.reshape(S, nhead, dh).transpose(1, 0, 2).astype(bf16)
    vh = v.reshape(S, nhead, dh).transpose(1, 0, 2).astype(bf16)
    s = jnp.einsum('hqd,hkd->hqk', qh, kh,
                   preferred_element_type=f32)                 # (H, tq, S) f32
    m = jnp.max(s, axis=-1, keepdims=True)
    e = jnp.exp(s - m)
    denom = jnp.sum(e, axis=-1, keepdims=True)
    a = (e * pl.reciprocal(denom, approx=True)).astype(bf16)   # softmax probs
    o = jnp.einsum('hqk,hkd->hqd', a, vh,
                   preferred_element_type=f32)                 # (H, tq, dh)
    attn = o.transpose(1, 0, 2).reshape(tq, D)                 # (tq, D) f32

    attn = jnp.dot(attn.astype(bf16), outw_ref[...],
                   preferred_element_type=f32) + outb_ref[...]

    inv_d = 1.0 / D

    # residual + LayerNorm1 (dropout1 is identity in eval mode), one-pass stats
    y = x_q + attn
    mu = jnp.sum(y, axis=-1, keepdims=True) * inv_d
    var = jnp.sum(y * y, axis=-1, keepdims=True) * inv_d - mu * mu
    y = (y - mu) * jax.lax.rsqrt(var + 1e-5) * ln1g_ref[...] + ln1b_ref[...]

    # FFN: linear2(relu(linear1(y)))
    h1 = jnp.dot(y.astype(bf16), w1_ref[...],
                 preferred_element_type=f32) + b1_ref[...]
    h1 = jnp.maximum(h1, 0.0)
    h2 = jnp.dot(h1.astype(bf16), w2_ref[...],
                 preferred_element_type=f32) + b2_ref[...]

    # residual + LayerNorm2
    z = y + h2
    mu2 = jnp.sum(z, axis=-1, keepdims=True) * inv_d
    var2 = jnp.sum(z * z, axis=-1, keepdims=True) * inv_d - mu2 * mu2
    z = (z - mu2) * jax.lax.rsqrt(var2 + 1e-5) * ln2g_ref[...] + ln2b_ref[...]

    if apply_final_ln:                      # final encoder norm fused in here
        mu3 = jnp.sum(z, axis=-1, keepdims=True) * inv_d
        var3 = jnp.sum(z * z, axis=-1, keepdims=True) * inv_d - mu3 * mu3
        z = (z - mu3) * jax.lax.rsqrt(var3 + 1e-5) * flng_ref[...] + flnb_ref[...]

    out_ref[0] = z.astype(out_ref.dtype)


def _layernorm_kernel(x_ref, g_ref, b_ref, out_ref):
    """Standalone LayerNorm (only used in the degenerate num_layers == 0 case)."""
    x = x_ref[0].astype(jnp.float32)
    inv_d = 1.0 / x.shape[-1]
    mu = jnp.sum(x, axis=-1, keepdims=True) * inv_d
    var = jnp.sum(x * x, axis=-1, keepdims=True) * inv_d - mu * mu
    y = (x - mu) * jax.lax.rsqrt(var + 1e-5) * g_ref[...] + b_ref[...]
    out_ref[0] = y.astype(out_ref.dtype)


# ----------------------------------------------------------------------------
# Wrappers (BlockSpecs / grid / parameter plumbing)
# ----------------------------------------------------------------------------
def _full_spec(shape):
    n = len(shape)
    return pl.BlockSpec(shape, lambda b, q, _n=n: (0,) * _n)


def _choose_tq(S, target=512):
    """Largest Q-row block <= target that divides S and is a multiple of 8."""
    if S <= target:
        return S
    for t in range(target, 7, -1):
        if S % t == 0 and t % 8 == 0:
            return t
    return S


def _vmem_budget(S, TQ, D, F_ff, nhead):
    """Rough per-step VMEM estimate (bytes), clamped to safe limits."""
    w = 2 * (D * 3 * D + D * D + D * F_ff + F_ff * D) * 2      # bf16 weights, 2 bufs
    bias = 2 * (3 * D + D + F_ff + D + 8 * D) * 4
    act = 2 * (2 * S * D + TQ * D) * 4                         # src/pos/out blocks
    live = (nhead * TQ * S + TQ * F_ff + 8 * TQ * D + 6 * S * D) * 4
    est = int(1.5 * (w + bias + act + live))
    return max(16 * 1024 * 1024, min(est, 48 * 1024 * 1024))   # stay < v7x 64 MiB


def encoder_layer_forward(src_bsd, pos_bsd, p, nhead, final_ln=None):
    B, S, D = src_bsd.shape
    assert D % nhead == 0
    F_ff = p['w1'].shape[1]
    TQ = _choose_tq(S)
    NQ = S // TQ
    bf16, f32 = jnp.bfloat16, jnp.float32

    if final_ln is None:
        flng = jnp.ones((1, D), f32)
        flnb = jnp.zeros((1, D), f32)
        apply_final_ln = False
    else:
        flng = final_ln['g'].astype(f32)
        flnb = final_ln['b'].astype(f32)
        apply_final_ln = True

    kernel = functools.partial(_encoder_layer_kernel, nhead=nhead, tq=TQ, nq=NQ,
                               apply_final_ln=apply_final_ln)

    in_specs = [
        pl.BlockSpec((1, S, D), lambda b, q: (b, 0, 0)),   # src (full sequence)
        pl.BlockSpec((1, S, D), lambda b, q: (b, 0, 0)),   # pos (full sequence)
        _full_spec((D, 3 * D)), _full_spec((1, 3 * D)),    # in_proj (bf16 W)
        _full_spec((D, D)),     _full_spec((1, D)),        # out_proj
        _full_spec((D, F_ff)),  _full_spec((1, F_ff)),     # linear1
        _full_spec((F_ff, D)),  _full_spec((1, D)),        # linear2
        _full_spec((1, D)), _full_spec((1, D)),            # layernorm1
        _full_spec((1, D)), _full_spec((1, D)),            # layernorm2
        _full_spec((1, D)), _full_spec((1, D)),            # final norm (optional)
    ]
    return pl.pallas_call(
        kernel,
        out_shape=jax.ShapeDtypeStruct((B, S, D), src_bsd.dtype),
        grid=(B, NQ),
        in_specs=in_specs,
        out_specs=pl.BlockSpec((1, TQ, D), lambda b, q: (b, q, 0)),
        compiler_params=pltpu.CompilerParams(
            dimension_semantics=("parallel", "parallel"),
            vmem_limit_bytes=_vmem_budget(S, TQ, D, F_ff, nhead)),
    )(src_bsd, pos_bsd,
      p['in_proj_w'].astype(bf16), p['in_proj_b'].astype(f32),
      p['out_proj_w'].astype(bf16), p['out_proj_b'].astype(f32),
      p['w1'].astype(bf16), p['b1'].astype(f32),
      p['w2'].astype(bf16), p['b2'].astype(f32),
      p['ln1_g'].astype(f32), p['ln1_b'].astype(f32),
      p['ln2_g'].astype(f32), p['ln2_b'].astype(f32),
      flng, flnb)


def layernorm_forward(x_bsd, gamma, beta):
    B, S, D = x_bsd.shape
    return pl.pallas_call(
        _layernorm_kernel,
        out_shape=jax.ShapeDtypeStruct((B, S, D), x_bsd.dtype),
        grid=(B,),
        in_specs=[pl.BlockSpec((1, S, D), lambda b: (b, 0, 0)),
                  pl.BlockSpec((1, D), lambda b: (0, 0)),
                  pl.BlockSpec((1, D), lambda b: (0, 0))],
        out_specs=pl.BlockSpec((1, S, D), lambda b: (b, 0, 0)),
        compiler_params=pltpu.CompilerParams(dimension_semantics=("parallel",)),
    )(x_bsd, gamma, beta)


def transformer_encoder_forward(src_sbd, layer_params, final_norm, pos_sbd,
                                nhead, mask=None, src_key_padding_mask=None):
    """Matches TransformerEncoder.forward(src, mask, src_key_padding_mask, pos)."""
    assert mask is None and src_key_padding_mask is None, \
        "TODO(synk): attn_mask / src_key_padding_mask not supported"
    # (S, B, D) -> (B, S, D) once for the whole stack (and back once at the end).
    out = jnp.transpose(src_sbd, (1, 0, 2))
    pos = jnp.transpose(pos_sbd, (1, 0, 2))
    n = len(layer_params)
    for i, p in enumerate(layer_params):
        fl = final_norm if (final_norm is not None and i == n - 1) else None
        out = encoder_layer_forward(out, pos, p, nhead, final_ln=fl)
    if final_norm is not None and n == 0:
        out = layernorm_forward(out, final_norm['g'], final_norm['b'])
    return jnp.transpose(out, (1, 0, 2))   # back to (S, B, D)


# ----------------------------------------------------------------------------
# Deterministic parameter construction + smoke test
# ----------------------------------------------------------------------------
def _make_layer_params(key, d_model, dim_ff):
    ks = jax.random.split(key, 4)
    f32 = jnp.float32
    return {
        'in_proj_w':  (jax.random.normal(ks[0], (d_model, 3 * d_model), f32) * 0.02),
        'in_proj_b':  jnp.zeros((1, 3 * d_model), f32),
        'out_proj_w': (jax.random.normal(ks[1], (d_model, d_model), f32) * 0.02),
        'out_proj_b': jnp.zeros((1, d_model), f32),
        'w1': (jax.random.normal(ks[2], (d_model, dim_ff), f32) * 0.02),
        'b1': jnp.zeros((1, dim_ff), f32),
        'w2': (jax.random.normal(ks[3], (dim_ff, d_model), f32) * 0.02),
        'b2': jnp.zeros((1, d_model), f32),
        'ln1_g': jnp.ones((1, d_model), f32), 'ln1_b': jnp.zeros((1, d_model), f32),
        'ln2_g': jnp.ones((1, d_model), f32), 'ln2_b': jnp.zeros((1, d_model), f32),
    }


if __name__ == "__main__":
    S, B, D, NHEAD, DIM_FF, NUM_LAYERS = 8, 2, 32, 4, 64, 2

    key = jax.random.PRNGKey(0)
    k_src, k_pos, *k_layers = jax.random.split(key, 2 + NUM_LAYERS)

    src = jax.random.normal(k_src, (S, B, D), jnp.float32)   # (seq, batch, d_model)
    pos = jax.random.normal(k_pos, (S, B, D), jnp.float32)

    layer_params = [_make_layer_params(k, D, DIM_FF) for k in k_layers]
    final_norm = {'g': jnp.ones((1, D), jnp.float32),
                  'b': jnp.zeros((1, D), jnp.float32)}

    out = transformer_encoder_forward(src, layer_params, final_norm, pos, NHEAD)
    out = jax.block_until_ready(out)
    assert out.shape == (S, B, D) and bool(jnp.all(jnp.isfinite(out)))
    print("KERNEL_OK")
</pallas_src>

<mosaic_0001>
module attributes {stable_mosaic.version = 11 : i64} {
  func.func @_encoder_layer_kernel(%arg0: i32, %arg1: i32, %arg2: memref<1x8x32xf32, #tpu.memory_space<vmem>>, %arg3: memref<1x8x32xf32, #tpu.memory_space<vmem>>, %arg4: memref<32x96xbf16, #tpu.memory_space<vmem>>, %arg5: memref<1x96xf32, #tpu.memory_space<vmem>>, %arg6: memref<32x32xbf16, #tpu.memory_space<vmem>>, %arg7: memref<1x32xf32, #tpu.memory_space<vmem>>, %arg8: memref<32x64xbf16, #tpu.memory_space<vmem>>, %arg9: memref<1x64xf32, #tpu.memory_space<vmem>>, %arg10: memref<64x32xbf16, #tpu.memory_space<vmem>>, %arg11: memref<1x32xf32, #tpu.memory_space<vmem>>, %arg12: memref<1x32xf32, #tpu.memory_space<vmem>>, %arg13: memref<1x32xf32, #tpu.memory_space<vmem>>, %arg14: memref<1x32xf32, #tpu.memory_space<vmem>>, %arg15: memref<1x32xf32, #tpu.memory_space<vmem>>, %arg16: memref<1x32xf32, #tpu.memory_space<vmem>>, %arg17: memref<1x32xf32, #tpu.memory_space<vmem>>, %arg18: memref<1x8x32xf32, #tpu.memory_space<vmem>>) attributes {dimension_semantics = [#tpu.dimension_semantics<parallel>, #tpu.dimension_semantics<parallel>], iteration_bounds = array<i64: 2, 1>, scalar_prefetch = 0 : i64, scratch_operands = 0 : i64, tpu.core_type = #tpu.core_type<tc>, window_params = [{transform_indices = @transform_0, window_bounds = array<i64: 1, 8, 32>}, {transform_indices = @transform_1, window_bounds = array<i64: 1, 8, 32>}, {pipeline_mode = #tpu.pipeline_mode<synchronous>, transform_indices = @transform_2, window_bounds = array<i64: 32, 96>}, {pipeline_mode = #tpu.pipeline_mode<synchronous>, transform_indices = @transform_3, window_bounds = array<i64: 1, 96>}, {pipeline_mode = #tpu.pipeline_mode<synchronous>, transform_indices = @transform_4, window_bounds = array<i64: 32, 32>}, {pipeline_mode = #tpu.pipeline_mode<synchronous>, transform_indices = @transform_5, window_bounds = array<i64: 1, 32>}, {pipeline_mode = #tpu.pipeline_mode<synchronous>, transform_indices = @transform_6, window_bounds = array<i64: 32, 64>}, {pipeline_mode = #tpu.pipeline_mode<synchronous>, transform_indices = @transform_7, window_bounds = array<i64: 1, 64>}, {pipeline_mode = #tpu.pipeline_mode<synchronous>, transform_indices = @transform_8, window_bounds = array<i64: 64, 32>}, {pipeline_mode = #tpu.pipeline_mode<synchronous>, transform_indices = @transform_9, window_bounds = array<i64: 1, 32>}, {pipeline_mode = #tpu.pipeline_mode<synchronous>, transform_indices = @transform_10, window_bounds = array<i64: 1, 32>}, {pipeline_mode = #tpu.pipeline_mode<synchronous>, transform_indices = @transform_11, window_bounds = array<i64: 1, 32>}, {pipeline_mode = #tpu.pipeline_mode<synchronous>, transform_indices = @transform_12, window_bounds = array<i64: 1, 32>}, {pipeline_mode = #tpu.pipeline_mode<synchronous>, transform_indices = @transform_13, window_bounds = array<i64: 1, 32>}, {pipeline_mode = #tpu.pipeline_mode<synchronous>, transform_indices = @transform_14, window_bounds = array<i64: 1, 32>}, {pipeline_mode = #tpu.pipeline_mode<synchronous>, transform_indices = @transform_15, window_bounds = array<i64: 1, 32>}, {transform_indices = @transform_16, window_bounds = array<i64: 1, 8, 32>}]} {
    %c0 = arith.constant 0 : index
    %c0_0 = arith.constant 0 : index
    %c0_1 = arith.constant 0 : index
    %0 = vector.load %arg2[%c0, %c0_0, %c0_1] : memref<1x8x32xf32, #tpu.memory_space<vmem>>, vector<1x8x32xf32>
    %1 = vector.shape_cast %0 : vector<1x8x32xf32> to vector<8x32xf32>
    %c0_2 = arith.constant 0 : index
    %c0_3 = arith.constant 0 : index
    %c0_4 = arith.constant 0 : index
    %2 = vector.load %arg3[%c0_2, %c0_3, %c0_4] : memref<1x8x32xf32, #tpu.memory_space<vmem>>, vector<1x8x32xf32>
    %3 = vector.shape_cast %2 : vector<1x8x32xf32> to vector<8x32xf32>
    %4 = arith.addf %1, %3 : vector<8x32xf32>
    %c0_5 = arith.constant 0 : index
    %c0_6 = arith.constant 0 : index
    %5 = vector.load %arg4[%c0_5, %c0_6] : memref<32x96xbf16, #tpu.memory_space<vmem>>, vector<32x96xbf16>
    %c0_7 = arith.constant 0 : index
    %c0_8 = arith.constant 0 : index
    %6 = vector.load %arg5[%c0_7, %c0_8] : memref<1x96xf32, #tpu.memory_space<vmem>>, vector<1x96xf32>
    %7 = arith.truncf %4 : vector<8x32xf32> to vector<8x32xbf16>
    %8 = vector.extract_strided_slice %5 {offsets = [0, 0], sizes = [32, 64], strides = [1, 1]} : vector<32x96xbf16> to vector<32x64xbf16>
    %cst = arith.constant dense<0.000000e+00> : vector<8x64xf32>
    %9 = tpu.matmul %7, %8, %cst {dimension_numbers = #tpu.dot_dimension_numbers<[1], [0], [0], [1], [0, 0, 1, 1], [], []>} : vector<8x32xbf16>, vector<32x64xbf16>, vector<8x64xf32> -> vector<8x64xf32>
    %10 = vector.extract_strided_slice %6 {offsets = [0, 0], sizes = [1, 64], strides = [1, 1]} : vector<1x96xf32> to vector<1x64xf32>
    %11 = vector.broadcast %10 : vector<1x64xf32> to vector<8x64xf32>
    %12 = arith.addf %9, %11 : vector<8x64xf32>
    %13 = vector.extract_strided_slice %12 {offsets = [0, 0], sizes = [8, 32], strides = [1, 1]} : vector<8x64xf32> to vector<8x32xf32>
    %14 = vector.extract_strided_slice %12 {offsets = [0, 32], sizes = [8, 32], strides = [1, 1]} : vector<8x64xf32> to vector<8x32xf32>
    %15 = arith.truncf %1 : vector<8x32xf32> to vector<8x32xbf16>
    %16 = vector.extract_strided_slice %5 {offsets = [0, 64], sizes = [32, 32], strides = [1, 1]} : vector<32x96xbf16> to vector<32x32xbf16>
    %cst_9 = arith.constant dense<0.000000e+00> : vector<8x32xf32>
    %17 = tpu.matmul %15, %16, %cst_9 {dimension_numbers = #tpu.dot_dimension_numbers<[1], [0], [0], [1], [0, 0, 1, 1], [], []>} : vector<8x32xbf16>, vector<32x32xbf16>, vector<8x32xf32> -> vector<8x32xf32>
    %18 = vector.extract_strided_slice %6 {offsets = [0, 64], sizes = [1, 32], strides = [1, 1]} : vector<1x96xf32> to vector<1x32xf32>
    %19 = vector.broadcast %18 : vector<1x32xf32> to vector<8x32xf32>
    %20 = arith.addf %17, %19 : vector<8x32xf32>
    %cst_10 = arith.constant 0.353553385 : f32
    %21 = vector.broadcast %cst_10 : f32 to vector<8x32xf32>
    %22 = arith.mulf %13, %21 : vector<8x32xf32>
    %23 = vector.shape_cast %22 : vector<8x32xf32> to vector<8x4x8xf32>
    %24 = tpu.transpose %23, [1, 0, 2] : vector<8x4x8xf32> -> vector<4x8x8xf32>
    %25 = arith.truncf %24 : vector<4x8x8xf32> to vector<4x8x8xbf16>
    %26 = vector.shape_cast %14 : vector<8x32xf32> to vector<8x4x8xf32>
    %27 = tpu.transpose %26, [1, 0, 2] : vector<8x4x8xf32> -> vector<4x8x8xf32>
    %28 = arith.truncf %27 : vector<4x8x8xf32> to vector<4x8x8xbf16>
    %29 = vector.shape_cast %20 : vector<8x32xf32> to vector<8x4x8xf32>
    %30 = tpu.transpose %29, [1, 0, 2] : vector<8x4x8xf32> -> vector<4x8x8xf32>
    %31 = arith.truncf %30 : vector<4x8x8xf32> to vector<4x8x8xbf16>
    "tpu.trace_start"() <{level = 10 : i32, message = "hqd,hkd->hqk"}> : () -> ()
    %cst_11 = arith.constant dense<0.000000e+00> : vector<4x8x8xf32>
    %32 = tpu.matmul %25, %28, %cst_11 {dimension_numbers = #tpu.dot_dimension_numbers<[2], [2], [1], [1], [0, 0, 0, 1, 1, 1], [0], [0]>} : vector<4x8x8xbf16>, vector<4x8x8xbf16>, vector<4x8x8xf32> -> vector<4x8x8xf32>
    "tpu.trace_stop"() : () -> ()
    %cst_12 = arith.constant dense<0xFF800000> : vector<4x8xf32>
    %33 = vector.multi_reduction <maximumf>, %32, %cst_12 [2] : vector<4x8x8xf32> to vector<4x8xf32>
    %34 = vector.shape_cast %33 : vector<4x8xf32> to vector<4x8x1xf32>
    %35 = vector.broadcast %34 : vector<4x8x1xf32> to vector<4x8x8xf32>
    %36 = arith.subf %32, %35 : vector<4x8x8xf32>
    %37 = math.exp %36 : vector<4x8x8xf32>
    %cst_13 = arith.constant dense<0.000000e+00> : vector<4x8xf32>
    %38 = vector.multi_reduction <add>, %37, %cst_13 [2] : vector<4x8x8xf32> to vector<4x8xf32>
    %39 = vector.shape_cast %38 : vector<4x8xf32> to vector<4x8x1xf32>
    %40 = tpu.reciprocal %39 {approx = true} : vector<4x8x1xf32> -> vector<4x8x1xf32>
    %41 = vector.broadcast %40 : vector<4x8x1xf32> to vector<4x8x8xf32>
    %42 = arith.mulf %37, %41 : vector<4x8x8xf32>
    %43 = arith.truncf %42 : vector<4x8x8xf32> to vector<4x8x8xbf16>
    "tpu.trace_start"() <{level = 10 : i32, message = "hqk,hkd->hqd"}> : () -> ()
    %cst_14 = arith.constant dense<0.000000e+00> : vector<4x8x8xf32>
    %44 = tpu.matmul %43, %31, %cst_14 {dimension_numbers = #tpu.dot_dimension_numbers<[2], [1], [1], [2], [0, 0, 0, 1, 1, 2], [0], [0]>} : vector<4x8x8xbf16>, vector<4x8x8xbf16>, vector<4x8x8xf32> -> vector<4x8x8xf32>
    "tpu.trace_stop"() : () -> ()
    %45 = tpu.transpose %44, [1, 0, 2] : vector<4x8x8xf32> -> vector<8x4x8xf32>
    %46 = vector.shape_cast %45 : vector<8x4x8xf32> to vector<8x32xf32>
    %47 = arith.truncf %46 : vector<8x32xf32> to vector<8x32xbf16>
    %c0_15 = arith.constant 0 : index
    %c0_16 = arith.constant 0 : index
    %48 = vector.load %arg6[%c0_15, %c0_16] : memref<32x32xbf16, #tpu.memory_space<vmem>>, vector<32x32xbf16>
    %cst_17 = arith.constant dense<0.000000e+00> : vector<8x32xf32>
    %49 = tpu.matmul %47, %48, %cst_17 {dimension_numbers = #tpu.dot_dimension_numbers<[1], [0], [0], [1], [0, 0, 1, 1], [], []>} : vector<8x32xbf16>, vector<32x32xbf16>, vector<8x32xf32> -> vector<8x32xf32>
    %c0_18 = arith.constant 0 : index
    %c0_19 = arith.constant 0 : index
    %50 = vector.load %arg7[%c0_18, %c0_19] : memref<1x32xf32, #tpu.memory_space<vmem>>, vector<1x32xf32>
    %51 = vector.broadcast %50 : vector<1x32xf32> to vector<8x32xf32>
    %52 = arith.addf %49, %51 : vector<8x32xf32>
    %53 = arith.addf %1, %52 : vector<8x32xf32>
    %cst_20 = arith.constant dense<0.000000e+00> : vector<8xf32>
    %54 = vector.multi_reduction <add>, %53, %cst_20 [1] : vector<8x32xf32> to vector<8xf32>
    %55 = vector.shape_cast %54 : vector<8xf32> to vector<8x1xf32>
    %cst_21 = arith.constant 3.125000e-02 : f32
    %56 = vector.broadcast %cst_21 : f32 to vector<8x1xf32>
    %57 = arith.mulf %55, %56 : vector<8x1xf32>
    %58 = arith.mulf %53, %53 : vector<8x32xf32>
    %cst_22 = arith.constant dense<0.000000e+00> : vector<8xf32>
    %59 = vector.multi_reduction <add>, %58, %cst_22 [1] : vector<8x32xf32> to vector<8xf32>
    %60 = vector.shape_cast %59 : vector<8xf32> to vector<8x1xf32>
    %cst_23 = arith.constant 3.125000e-02 : f32
    %61 = vector.broadcast %cst_23 : f32 to vector<8x1xf32>
    %62 = arith.mulf %60, %61 : vector<8x1xf32>
    %63 = arith.mulf %57, %57 : vector<8x1xf32>
    %64 = arith.subf %62, %63 : vector<8x1xf32>
    %65 = vector.broadcast %57 : vector<8x1xf32> to vector<8x32xf32>
    %66 = arith.subf %53, %65 : vector<8x32xf32>
    %cst_24 = arith.constant 9.99999974E-6 : f32
    %67 = vector.broadcast %cst_24 : f32 to vector<8x1xf32>
    %68 = arith.addf %64, %67 : vector<8x1xf32>
    %69 = math.rsqrt %68 : vector<8x1xf32>
    %70 = vector.broadcast %69 : vector<8x1xf32> to vector<8x32xf32>
    %71 = arith.mulf %66, %70 : vector<8x32xf32>
    %c0_25 = arith.constant 0 : index
    %c0_26 = arith.constant 0 : index
    %72 = vector.load %arg12[%c0_25, %c0_26] : memref<1x32xf32, #tpu.memory_space<vmem>>, vector<1x32xf32>
    %73 = vector.broadcast %72 : vector<1x32xf32> to vector<8x32xf32>
    %74 = arith.mulf %71, %73 : vector<8x32xf32>
    %c0_27 = arith.constant 0 : index
    %c0_28 = arith.constant 0 : index
    %75 = vector.load %arg13[%c0_27, %c0_28] : memref<1x32xf32, #tpu.memory_space<vmem>>, vector<1x32xf32>
    %76 = vector.broadcast %75 : vector<1x32xf32> to vector<8x32xf32>
    %77 = arith.addf %74, %76 : vector<8x32xf32>
    %78 = arith.truncf %77 : vector<8x32xf32> to vector<8x32xbf16>
    %c0_29 = arith.constant 0 : index
    %c0_30 = arith.constant 0 : index
    %79 = vector.load %arg8[%c0_29, %c0_30] : memref<32x64xbf16, #tpu.memory_space<vmem>>, vector<32x64xbf16>
    %cst_31 = arith.constant dense<0.000000e+00> : vector<8x64xf32>
    %80 = tpu.matmul %78, %79, %cst_31 {dimension_numbers = #tpu.dot_dimension_numbers<[1], [0], [0], [1], [0, 0, 1, 1], [], []>} : vector<8x32xbf16>, vector<32x64xbf16>, vector<8x64xf32> -> vector<8x64xf32>
    %c0_32 = arith.constant 0 : index
    %c0_33 = arith.constant 0 : index
    %81 = vector.load %arg9[%c0_32, %c0_33] : memref<1x64xf32, #tpu.memory_space<vmem>>, vector<1x64xf32>
    %82 = vector.broadcast %81 : vector<1x64xf32> to vector<8x64xf32>
    %83 = arith.addf %80, %82 : vector<8x64xf32>
    %cst_34 = arith.constant 0.000000e+00 : f32
    %84 = vector.broadcast %cst_34 : f32 to vector<8x64xf32>
    %85 = arith.maximumf %83, %84 : vector<8x64xf32>
    %86 = arith.truncf %85 : vector<8x64xf32> to vector<8x64xbf16>
    %c0_35 = arith.constant 0 : index
    %c0_36 = arith.constant 0 : index
    %87 = vector.load %arg10[%c0_35, %c0_36] : memref<64x32xbf16, #tpu.memory_space<vmem>>, vector<64x32xbf16>
    %cst_37 = arith.constant dense<0.000000e+00> : vector<8x32xf32>
    %88 = tpu.matmul %86, %87, %cst_37 {dimension_numbers = #tpu.dot_dimension_numbers<[1], [0], [0], [1], [0, 0, 1, 1], [], []>} : vector<8x64xbf16>, vector<64x32xbf16>, vector<8x32xf32> -> vector<8x32xf32>
    %c0_38 = arith.constant 0 : index
    %c0_39 = arith.constant 0 : index
    %89 = vector.load %arg11[%c0_38, %c0_39] : memref<1x32xf32, #tpu.memory_space<vmem>>, vector<1x32xf32>
    %90 = vector.broadcast %89 : vector<1x32xf32> to vector<8x32xf32>
    %91 = arith.addf %88, %90 : vector<8x32xf32>
    %92 = arith.addf %77, %91 : vector<8x32xf32>
    %cst_40 = arith.constant dense<0.000000e+00> : vector<8xf32>
    %93 = vector.multi_reduction <add>, %92, %cst_40 [1] : vector<8x32xf32> to vector<8xf32>
    %94 = vector.shape_cast %93 : vector<8xf32> to vector<8x1xf32>
    %cst_41 = arith.constant 3.125000e-02 : f32
    %95 = vector.broadcast %cst_41 : f32 to vector<8x1xf32>
    %96 = arith.mulf %94, %95 : vector<8x1xf32>
    %97 = arith.mulf %92, %92 : vector<8x32xf32>
    %cst_42 = arith.constant dense<0.000000e+00> : vector<8xf32>
    %98 = vector.multi_reduction <add>, %97, %cst_42 [1] : vector<8x32xf32> to vector<8xf32>
    %99 = vector.shape_cast %98 : vector<8xf32> to vector<8x1xf32>
    %cst_43 = arith.constant 3.125000e-02 : f32
    %100 = vector.broadcast %cst_43 : f32 to vector<8x1xf32>
    %101 = arith.mulf %99, %100 : vector<8x1xf32>
    %102 = arith.mulf %96, %96 : vector<8x1xf32>
    %103 = arith.subf %101, %102 : vector<8x1xf32>
    %104 = vector.broadcast %96 : vector<8x1xf32> to vector<8x32xf32>
    %105 = arith.subf %92, %104 : vector<8x32xf32>
    %cst_44 = arith.constant 9.99999974E-6 : f32
    %106 = vector.broadcast %cst_44 : f32 to vector<8x1xf32>
    %107 = arith.addf %103, %106 : vector<8x1xf32>
    %108 = math.rsqrt %107 : vector<8x1xf32>
    %109 = vector.broadcast %108 : vector<8x1xf32> to vector<8x32xf32>
    %110 = arith.mulf %105, %109 : vector<8x32xf32>
    %c0_45 = arith.constant 0 : index
    %c0_46 = arith.constant 0 : index
    %111 = vector.load %arg14[%c0_45, %c0_46] : memref<1x32xf32, #tpu.memory_space<vmem>>, vector<1x32xf32>
    %112 = vector.broadcast %111 : vector<1x32xf32> to vector<8x32xf32>
    %113 = arith.mulf %110, %112 : vector<8x32xf32>
    %c0_47 = arith.constant 0 : index
    %c0_48 = arith.constant 0 : index
    %114 = vector.load %arg15[%c0_47, %c0_48] : memref<1x32xf32, #tpu.memory_space<vmem>>, vector<1x32xf32>
    %115 = vector.broadcast %114 : vector<1x32xf32> to vector<8x32xf32>
    %116 = arith.addf %113, %115 : vector<8x32xf32>
    %c0_49 = arith.constant 0 : index
    %c0_50 = arith.constant 0 : index
    %c0_51 = arith.constant 0 : index
    %117 = vector.load %arg18[%c0_49, %c0_50, %c0_51] : memref<1x8x32xf32, #tpu.memory_space<vmem>>, vector<1x8x32xf32>
    %118 = vector.shape_cast %117 : vector<1x8x32xf32> to vector<8x32xf32>
    %119 = vector.shape_cast %116 : vector<8x32xf32> to vector<1x8x32xf32>
    tpu.vector_store %arg18[%c0_49, %c0_50, %c0_51], %119 {strides = array<i32>} : memref<1x8x32xf32, #tpu.memory_space<vmem>>, vector<1x8x32xf32>,
    return
  }
  func.func @transform_0(%arg0: i32, %arg1: i32) -> (i32, i32, i32) {
    %c0_i32 = arith.constant 0 : i32
    %c0_i32_0 = arith.constant 0 : i32
    %c0_i32_1 = arith.constant 0 : i32
    return %arg0, %c0_i32, %c0_i32_0 : i32, i32, i32
  }
  func.func @transform_1(%arg0: i32, %arg1: i32) -> (i32, i32, i32) {
    %c0_i32 = arith.constant 0 : i32
    %c0_i32_0 = arith.constant 0 : i32
    %c0_i32_1 = arith.constant 0 : i32
    return %arg0, %c0_i32, %c0_i32_0 : i32, i32, i32
  }
  func.func @transform_2(%arg0: i32, %arg1: i32) -> (i32, i32) {
    %c0_i32 = arith.constant 0 : i32
    %c0_i32_0 = arith.constant 0 : i32
    %c0_i32_1 = arith.constant 0 : i32
    return %c0_i32, %c0_i32_0 : i32, i32
  }
  func.func @transform_3(%arg0: i32, %arg1: i32) -> (i32, i32) {
    %c0_i32 = arith.constant 0 : i32
    %c0_i32_0 = arith.constant 0 : i32
    %c0_i32_1 = arith.constant 0 : i32
    return %c0_i32, %c0_i32_0 : i32, i32
  }
  func.func @transform_4(%arg0: i32, %arg1: i32) -> (i32, i32) {
    %c0_i32 = arith.constant 0 : i32
    %c0_i32_0 = arith.constant 0 : i32
    %c0_i32_1 = arith.constant 0 : i32
    return %c0_i32, %c0_i32_0 : i32, i32
  }
  func.func @transform_5(%arg0: i32, %arg1: i32) -> (i32, i32) {
    %c0_i32 = arith.constant 0 : i32
    %c0_i32_0 = arith.constant 0 : i32
    %c0_i32_1 = arith.constant 0 : i32
    return %c0_i32, %c0_i32_0 : i32, i32
  }
  func.func @transform_6(%arg0: i32, %arg1: i32) -> (i32, i32) {
    %c0_i32 = arith.constant 0 : i32
    %c0_i32_0 = arith.constant 0 : i32
    %c0_i32_1 = arith.constant 0 : i32
    return %c0_i32, %c0_i32_0 : i32, i32
  }
  func.func @transform_7(%arg0: i32, %arg1: i32) -> (i32, i32) {
    %c0_i32 = arith.constant 0 : i32
    %c0_i32_0 = arith.constant 0 : i32
    %c0_i32_1 = arith.constant 0 : i32
    return %c0_i32, %c0_i32_0 : i32, i32
  }
  func.func @transform_8(%arg0: i32, %arg1: i32) -> (i32, i32) {
    %c0_i32 = arith.constant 0 : i32
    %c0_i32_0 = arith.constant 0 : i32
    %c0_i32_1 = arith.constant 0 : i32
    return %c0_i32, %c0_i32_0 : i32, i32
  }
  func.func @transform_9(%arg0: i32, %arg1: i32) -> (i32, i32) {
    %c0_i32 = arith.constant 0 : i32
    %c0_i32_0 = arith.constant 0 : i32
    %c0_i32_1 = arith.constant 0 : i32
    return %c0_i32, %c0_i32_0 : i32, i32
  }
  func.func @transform_10(%arg0: i32, %arg1: i32) -> (i32, i32) {
    %c0_i32 = arith.constant 0 : i32
    %c0_i32_0 = arith.constant 0 : i32
    %c0_i32_1 = arith.constant 0 : i32
    return %c0_i32, %c0_i32_0 : i32, i32
  }
  func.func @transform_11(%arg0: i32, %arg1: i32) -> (i32, i32) {
    %c0_i32 = arith.constant 0 : i32
    %c0_i32_0 = arith.constant 0 : i32
    %c0_i32_1 = arith.constant 0 : i32
    return %c0_i32, %c0_i32_0 : i32, i32
  }
  func.func @transform_12(%arg0: i32, %arg1: i32) -> (i32, i32) {
    %c0_i32 = arith.constant 0 : i32
    %c0_i32_0 = arith.constant 0 : i32
    %c0_i32_1 = arith.constant 0 : i32
    return %c0_i32, %c0_i32_0 : i32, i32
  }
  func.func @transform_13(%arg0: i32, %arg1: i32) -> (i32, i32) {
    %c0_i32 = arith.constant 0 : i32
    %c0_i32_0 = arith.constant 0 : i32
    %c0_i32_1 = arith.constant 0 : i32
    return %c0_i32, %c0_i32_0 : i32, i32
  }
  func.func @transform_14(%arg0: i32, %arg1: i32) -> (i32, i32) {
    %c0_i32 = arith.constant 0 : i32
    %c0_i32_0 = arith.constant 0 : i32
    %c0_i32_1 = arith.constant 0 : i32
    return %c0_i32, %c0_i32_0 : i32, i32
  }
  func.func @transform_15(%arg0: i32, %arg1: i32) -> (i32, i32) {
    %c0_i32 = arith.constant 0 : i32
    %c0_i32_0 = arith.constant 0 : i32
    %c0_i32_1 = arith.constant 0 : i32
    return %c0_i32, %c0_i32_0 : i32, i32
  }
  func.func @transform_16(%arg0: i32, %arg1: i32) -> (i32, i32, i32) {
    %c0_i32 = arith.constant 0 : i32
    %c0_i32_0 = arith.constant 0 : i32
    return %arg0, %arg1, %c0_i32 : i32, i32, i32
  }
}

</mosaic_0001>

<llo_original>
// kernel: tpu_custom_call.1
$region0: #{tpu_custom_call.1}
  #allocation0 [shape = 'u32[]', space=smem, size = 0x4, offset = 0x4, fixed_abs, tag = 'smem constant byte address 0x4 - core index']
  #allocation1 [shape = 'u32[144,128]{1,0:T(1,128)}', space=vmem, size = 0x12000, scoped, tag = 'internal scratch']
  %s0 = inlined_call_operand.vmem [shape: f32[2,8,32], index: 0, kind: input, shape index: {}]
  %s1 = inlined_call_operand.vmem [shape: f32[2,8,32], index: 1, kind: input, shape index: {}]
  %s2 = inlined_call_operand.vmem [shape: bf16[32,96], index: 2, kind: input, shape index: {}]
  %s3 = inlined_call_operand.vmem [shape: f32[1,96], index: 3, kind: input, shape index: {}]
  %s4 = inlined_call_operand.hbm [shape: bf16[32,32], index: 4, kind: input, shape index: {}]
  %s5 = inlined_call_operand.vmem [shape: f32[1,32], index: 5, kind: input, shape index: {}]
  %s6 = inlined_call_operand.hbm [shape: bf16[32,64], index: 6, kind: input, shape index: {}]
  %s7 = inlined_call_operand.vmem [shape: f32[1,64], index: 7, kind: input, shape index: {}]
  %s8 = inlined_call_operand.vmem [shape: bf16[64,32], index: 8, kind: input, shape index: {}]
  %s9 = inlined_call_operand.vmem [shape: f32[1,32], index: 9, kind: input, shape index: {}]
  %s10 = inlined_call_operand.vmem [shape: f32[1,32], index: 10, kind: input, shape index: {}]
  %s11 = inlined_call_operand.vmem [shape: f32[1,32], index: 11, kind: input, shape index: {}]
  %s12 = inlined_call_operand.vmem [shape: f32[1,32], index: 12, kind: input, shape index: {}]
  %s13 = inlined_call_operand.vmem [shape: f32[1,32], index: 13, kind: input, shape index: {}]
  %s14 = inlined_call_operand.vmem [shape: f32[1,32], index: 14, kind: input, shape index: {}]
  %s15 = inlined_call_operand.vmem [shape: f32[1,32], index: 15, kind: input, shape index: {}]
  %s16 = inlined_call_operand.hbm [shape: f32[2,8,32], index: 16, kind: output, shape index: {}]
  %s17 = sld [smem:[#allocation0]]
  $region105: #{tpu_custom_call.1} parent=0
    _
  %s19 = ssub.s32 1, %s17
  %s20 = scalar_select 0, %s19, %s17
  $region1: #{tpu_custom_call.1} parent=0
    #allocation2 [shape = 'u8[8192]{0}', space=vmem, size = 0x2000, scoped, tag = 'input window, operand 4, single buffered']
    #allocation3 [shape = 's32[2]{0}', space=sflag, size = 0x8, scoped, tag = 'scoped memory for tpu_custom_call.1']
    #allocation4 [shape = 's32[2]{0}', space=sflag, size = 0x8, scoped, tag = 'scoped memory for tpu_custom_call.1']
    #allocation5 [shape = 'u8[8192]{0}', space=vmem, size = 0x2000, scoped, tag = 'input window, operand 6, single buffered']
    #allocation6 [shape = 's32[1]{0}', space=sflag, size = 0x4, scoped, tag = 'scoped memory for tpu_custom_call.1']
    #allocation7 [shape = 'u8[8192]{0}', space=vmem, size = 0x2000, scoped, tag = 'output window, operand 0']
    %21 = vsyncpa [#allocation3], 0
    %22 = vsyncpa [#allocation6], 0
    %23 = vsyncpa [#allocation4], 0
    %s24 = scalar_lea.sflag [#allocation4], 1
    %25 = vsyncpa %s24, 0
    loop: start=0, step=1, limit=4
    $region2: #{tpu_custom_call.1} parent=1 // loop_pre_header
      _
    $region3: #{tpu_custom_call.1} parent=1 // loop_header
      %s27 = sphi 0, %s31
      %p28 = scmp.ge.s32.totalorder %s27, 4
      %s34 = sphi 0, %s46
      %s35 = sphi 0, %s42
      %s36 = sphi 0, %s34
      %s37 = sphi 0, %s35
      %s38 = sphi 0, %s36
      %s39 = sphi 0, %s37
      %s49 = sphi 0, %s51
      %s52 = sphi 0, %s49
      %s53 = sphi 0, %s52
      %s69 = sphi 0, %s53
      %s75 = sphi 0, %s77
      %s78 = sphi 0, %s75
      %s79 = sphi 0, %s78
      %s95 = sphi 0, %s79
      %s99 = sphi 0, %s99
      %s101 = sphi 0, %s99
      %s102 = sphi 0, %s101
      %s116 = sphi 0, %s102
      %s120 = sphi 0, %s120
      %s122 = sphi 0, %s120
      %s123 = sphi 0, %s122
      %s137 = sphi 0, %s123
      %s141 = sphi 0, %s141
      %s143 = sphi 0, %s141
      %s144 = sphi 0, %s143
      %s158 = sphi 0, %s144
      %s162 = sphi 0, %s162
      %s164 = sphi 0, %s162
      %s165 = sphi 0, %s164
      %s179 = sphi 0, %s165
      %s183 = sphi 0, %s183
      %s185 = sphi 0, %s183
      %s186 = sphi 0, %s185
      %s200 = sphi 0, %s186
      %s204 = sphi 0, %s204
      %s206 = sphi 0, %s204
      %s207 = sphi 0, %s206
      %s221 = sphi 0, %s207
      %s225 = sphi 0, %s225
      %s227 = sphi 0, %s225
      %s228 = sphi 0, %s227
      %s242 = sphi 0, %s228
      %s246 = sphi 0, %s246
      %s248 = sphi 0, %s246
      %s249 = sphi 0, %s248
      %s263 = sphi 0, %s249
      %s267 = sphi 0, %s267
      %s269 = sphi 0, %s267
      %s270 = sphi 0, %s269
      %s284 = sphi 0, %s270
      %s288 = sphi 0, %s288
      %s290 = sphi 0, %s288
      %s291 = sphi 0, %s290
      %s305 = sphi 0, %s291
      %s309 = sphi 0, %s309
      %s311 = sphi 0, %s309
      %s312 = sphi 0, %s311
      %s326 = sphi 0, %s312
      %s330 = sphi 0, %s330
      %s332 = sphi 0, %s330
      %s333 = sphi 0, %s332
      %s347 = sphi 0, %s333
      %s351 = sphi 0, %s351
      %s353 = sphi 0, %s351
      %s354 = sphi 0, %s353
      %s368 = sphi 0, %s354
      %s372 = sphi 0, %s372
      %s374 = sphi 0, %s372
      %s375 = sphi 0, %s374
      %s389 = sphi 0, %s375
      %s397 = sphi 0, %s399
      %s400 = sphi 0, %s397
      %s401 = sphi 0, %s400
      %s417 = sphi 0, %s401
    $region4: #{tpu_custom_call.1} parent=1 // loop_header_branch
      %30 = sbr.rel (%p28) target = $region8
    $region5: #{tpu_custom_call.1} parent=1 // loop_body
      %s32 = ssub.s32 %s27, 1
      %s33 = ssub.s32 %s27, 2
      %s40 = sadd.s32 1, %s35
      %p41 = scmp.ge.s32.totalorder %s40, 1
      %s42 = scalar_select %p41, 0, %s40
      %s43 = sadd.s32 1, %s34
      %s44 = scalar_select %p41, %s43, %s34
      %p45 = scmp.ge.s32.totalorder %s44, 2
      %s46 = scalar_select %p45, 0, %s44
      %s47 = ssub.s32 %s34, %s46
      %p48 = scmp.eq.s32.totalorder %s47, 0
      %s50 = sadd.s32 %s49, 1
      %s51 = scalar_select %p48, %s49, %s50
      %p54 = pneg %p48
      %p55 = scmp.eq.s32.totalorder %s27, 1
      %p56 = por %p54, %p55
      %p57 = scmp.ne.s32.totalorder %s49, %s52
      %p58 = scmp.eq.s32.totalorder %s27, 0
      %p59 = por %p57, %p58
      %p60 = scmp.ne.s32.totalorder %s49, %s52
      %p61 = scmp.eq.s32.totalorder %s32, 1
      %p62 = por %p60, %p61
      %p63 = scmp.ne.s32.totalorder %s52, %s53
      %p64 = scmp.eq.s32.totalorder %s32, 0
      %p65 = por %p63, %p64
      %p66 = scmp.ne.s32.totalorder %s52, %s53
      %p67 = scmp.eq.s32.totalorder %s33, 1
      %p68 = por %p66, %p67
      %p70 = scmp.ne.s32.totalorder %s53, %s69
      %p71 = scmp.eq.s32.totalorder %s33, 0
      %p72 = por %p70, %p71
      %s73 = ssub.s32 %s34, %s46
      %p74 = scmp.eq.s32.totalorder %s73, 0
      %s76 = sadd.s32 %s75, 1
      %s77 = scalar_select %p74, %s75, %s76
      %p80 = pneg %p74
      %p81 = scmp.eq.s32.totalorder %s27, 1
      %p82 = por %p80, %p81
      %p83 = scmp.ne.s32.totalorder %s75, %s78
      %p84 = scmp.eq.s32.totalorder %s27, 0
      %p85 = por %p83, %p84
      %p86 = scmp.ne.s32.totalorder %s75, %s78
      %p87 = scmp.eq.s32.totalorder %s32, 1
      %p88 = por %p86, %p87
      %p89 = scmp.ne.s32.totalorder %s78, %s79
      %p90 = scmp.eq.s32.totalorder %s32, 0
      %p91 = por %p89, %p90
      %p92 = scmp.ne.s32.totalorder %s78, %s79
      %p93 = scmp.eq.s32.totalorder %s33, 1
      %p94 = por %p92, %p93
      %p96 = scmp.ne.s32.totalorder %s79, %s95
      %p97 = scmp.eq.s32.totalorder %s33, 0
      %p98 = por %p96, %p97
      %s100 = sadd.s32 %s99, 1
      %p103 = scmp.eq.s32.totalorder %s27, 1
      %p104 = scmp.ne.s32.totalorder %s99, %s101
      %p105 = scmp.eq.s32.totalorder %s27, 0
      %p106 = por %p104, %p105
      %p107 = scmp.ne.s32.totalorder %s99, %s101
      %p108 = scmp.eq.s32.totalorder %s32, 1
      %p109 = por %p107, %p108
      %p110 = scmp.ne.s32.totalorder %s101, %s102
      %p111 = scmp.eq.s32.totalorder %s32, 0
      %p112 = por %p110, %p111
      %p113 = scmp.ne.s32.totalorder %s101, %s102
      %p114 = scmp.eq.s32.totalorder %s33, 1
      %p115 = por %p113, %p114
      %p117 = scmp.ne.s32.totalorder %s102, %s116
      %p118 = scmp.eq.s32.totalorder %s33, 0
      %p119 = por %p117, %p118
      %s121 = sadd.s32 %s120, 1
      %p124 = scmp.eq.s32.totalorder %s27, 1
      %p125 = scmp.ne.s32.totalorder %s120, %s122
      %p126 = scmp.eq.s32.totalorder %s27, 0
      %p127 = por %p125, %p126
      %p128 = scmp.ne.s32.totalorder %s120, %s122
      %p129 = scmp.eq.s32.totalorder %s32, 1
      %p130 = por %p128, %p129
      %p131 = scmp.ne.s32.totalorder %s122, %s123
      %p132 = scmp.eq.s32.totalorder %s32, 0
      %p133 = por %p131, %p132
      %p134 = scmp.ne.s32.totalorder %s122, %s123
      %p135 = scmp.eq.s32.totalorder %s33, 1
      %p136 = por %p134, %p135
      %p138 = scmp.ne.s32.totalorder %s123, %s137
      %p139 = scmp.eq.s32.totalorder %s33, 0
      %p140 = por %p138, %p139
      %s142 = sadd.s32 %s141, 1
      %p145 = scmp.eq.s32.totalorder %s27, 1
      %p146 = scmp.ne.s32.totalorder %s141, %s143
      %p147 = scmp.eq.s32.totalorder %s27, 0
      %p148 = por %p146, %p147
      %p149 = scmp.ne.s32.totalorder %s141, %s143
      %p150 = scmp.eq.s32.totalorder %s32, 1
      %p151 = por %p149, %p150
      %p152 = scmp.ne.s32.totalorder %s143, %s144
      %p153 = scmp.eq.s32.totalorder %s32, 0
      %p154 = por %p152, %p153
      %p155 = scmp.ne.s32.totalorder %s143, %s144
      %p156 = scmp.eq.s32.totalorder %s33, 1
      %p157 = por %p155, %p156
      %p159 = scmp.ne.s32.totalorder %s144, %s158
      %p160 = scmp.eq.s32.totalorder %s33, 0
      %p161 = por %p159, %p160
      %s163 = sadd.s32 %s162, 1
      %p166 = scmp.eq.s32.totalorder %s27, 1
      %p167 = scmp.ne.s32.totalorder %s162, %s164
      %p168 = scmp.eq.s32.totalorder %s27, 0
      %p169 = por %p167, %p168
      %p170 = scmp.ne.s32.totalorder %s162, %s164
      %p171 = scmp.eq.s32.totalorder %s32, 1
      %p172 = por %p170, %p171
      %p173 = scmp.ne.s32.totalorder %s164, %s165
      %p174 = scmp.eq.s32.totalorder %s32, 0
      %p175 = por %p173, %p174
      %p176 = scmp.ne.s32.totalorder %s164, %s165
      %p177 = scmp.eq.s32.totalorder %s33, 1
      %p178 = por %p176, %p177
      %p180 = scmp.ne.s32.totalorder %s165, %s179
      %p181 = scmp.eq.s32.totalorder %s33, 0
      %p182 = por %p180, %p181
      %s184 = sadd.s32 %s183, 1
      %p187 = scmp.eq.s32.totalorder %s27, 1
      %p188 = scmp.ne.s32.totalorder %s183, %s185
      %p189 = scmp.eq.s32.totalorder %s27, 0
      %p190 = por %p188, %p189
      %p191 = scmp.ne.s32.totalorder %s183, %s185
      %p192 = scmp.eq.s32.totalorder %s32, 1
      %p193 = por %p191, %p192
      %p194 = scmp.ne.s32.totalorder %s185, %s186
      %p195 = scmp.eq.s32.totalorder %s32, 0
      %p196 = por %p194, %p195
      %p197 = scmp.ne.s32.totalorder %s185, %s186
      %p198 = scmp.eq.s32.totalorder %s33, 1
      %p199 = por %p197, %p198
      %p201 = scmp.ne.s32.totalorder %s186, %s200
      %p202 = scmp.eq.s32.totalorder %s33, 0
      %p203 = por %p201, %p202
      %s205 = sadd.s32 %s204, 1
      %p208 = scmp.eq.s32.totalorder %s27, 1
      %p209 = scmp.ne.s32.totalorder %s204, %s206
      %p210 = scmp.eq.s32.totalorder %s27, 0
      %p211 = por %p209, %p210
      %p212 = scmp.ne.s32.totalorder %s204, %s206
      %p213 = scmp.eq.s32.totalorder %s32, 1
      %p214 = por %p212, %p213
      %p215 = scmp.ne.s32.totalorder %s206, %s207
      %p216 = scmp.eq.s32.totalorder %s32, 0
      %p217 = por %p215, %p216
      %p218 = scmp.ne.s32.totalorder %s206, %s207
      %p219 = scmp.eq.s32.totalorder %s33, 1
      %p220 = por %p218, %p219
      %p222 = scmp.ne.s32.totalorder %s207, %s221
      %p223 = scmp.eq.s32.totalorder %s33, 0
      %p224 = por %p222, %p223
      %s226 = sadd.s32 %s225, 1
      %p229 = scmp.eq.s32.totalorder %s27, 1
      %p230 = scmp.ne.s32.totalorder %s225, %s227
      %p231 = scmp.eq.s32.totalorder %s27, 0
      %p232 = por %p230, %p231
      %p233 = scmp.ne.s32.totalorder %s225, %s227
      %p234 = scmp.eq.s32.totalorder %s32, 1
      %p235 = por %p233, %p234
      %p236 = scmp.ne.s32.totalorder %s227, %s228
      %p237 = scmp.eq.s32.totalorder %s32, 0
      %p238 = por %p236, %p237
      %p239 = scmp.ne.s32.totalorder %s227, %s228
      %p240 = scmp.eq.s32.totalorder %s33, 1
      %p241 = por %p239, %p240
      %p243 = scmp.ne.s32.totalorder %s228, %s242
      %p244 = scmp.eq.s32.totalorder %s33, 0
      %p245 = por %p243, %p244
      %s247 = sadd.s32 %s246, 1
      %p250 = scmp.eq.s32.totalorder %s27, 1
      %p251 = scmp.ne.s32.totalorder %s246, %s248
      %p252 = scmp.eq.s32.totalorder %s27, 0
      %p253 = por %p251, %p252
      %p254 = scmp.ne.s32.totalorder %s246, %s248
      %p255 = scmp.eq.s32.totalorder %s32, 1
      %p256 = por %p254, %p255
      %p257 = scmp.ne.s32.totalorder %s248, %s249
      %p258 = scmp.eq.s32.totalorder %s32, 0
      %p259 = por %p257, %p258
      %p260 = scmp.ne.s32.totalorder %s248, %s249
      %p261 = scmp.eq.s32.totalorder %s33, 1
      %p262 = por %p260, %p261
      %p264 = scmp.ne.s32.totalorder %s249, %s263
      %p265 = scmp.eq.s32.totalorder %s33, 0
      %p266 = por %p264, %p265
      %s268 = sadd.s32 %s267, 1
      %p271 = scmp.eq.s32.totalorder %s27, 1
      %p272 = scmp.ne.s32.totalorder %s267, %s269
      %p273 = scmp.eq.s32.totalorder %s27, 0
      %p274 = por %p272, %p273
      %p275 = scmp.ne.s32.totalorder %s267, %s269
      %p276 = scmp.eq.s32.totalorder %s32, 1
      %p277 = por %p275, %p276
      %p278 = scmp.ne.s32.totalorder %s269, %s270
      %p279 = scmp.eq.s32.totalorder %s32, 0
      %p280 = por %p278, %p279
      %p281 = scmp.ne.s32.totalorder %s269, %s270
      %p282 = scmp.eq.s32.totalorder %s33, 1
      %p283 = por %p281, %p282
      %p285 = scmp.ne.s32.totalorder %s270, %s284
      %p286 = scmp.eq.s32.totalorder %s33, 0
      %p287 = por %p285, %p286
      %s289 = sadd.s32 %s288, 1
      %p292 = scmp.eq.s32.totalorder %s27, 1
      %p293 = scmp.ne.s32.totalorder %s288, %s290
      %p294 = scmp.eq.s32.totalorder %s27, 0
      %p295 = por %p293, %p294
      %p296 = scmp.ne.s32.totalorder %s288, %s290
      %p297 = scmp.eq.s32.totalorder %s32, 1
      %p298 = por %p296, %p297
      %p299 = scmp.ne.s32.totalorder %s290, %s291
      %p300 = scmp.eq.s32.totalorder %s32, 0
      %p301 = por %p299, %p300
      %p302 = scmp.ne.s32.totalorder %s290, %s291
      %p303 = scmp.eq.s32.totalorder %s33, 1
      %p304 = por %p302, %p303
      %p306 = scmp.ne.s32.totalorder %s291, %s305
      %p307 = scmp.eq.s32.totalorder %s33, 0
      %p308 = por %p306, %p307
      %s310 = sadd.s32 %s309, 1
      %p313 = scmp.eq.s32.totalorder %s27, 1
      %p314 = scmp.ne.s32.totalorder %s309, %s311
      %p315 = scmp.eq.s32.totalorder %s27, 0
      %p316 = por %p314, %p315
      %p317 = scmp.ne.s32.totalorder %s309, %s311
      %p318 = scmp.eq.s32.totalorder %s32, 1
      %p319 = por %p317, %p318
      %p320 = scmp.ne.s32.totalorder %s311, %s312
      %p321 = scmp.eq.s32.totalorder %s32, 0
      %p322 = por %p320, %p321
      %p323 = scmp.ne.s32.totalorder %s311, %s312
      %p324 = scmp.eq.s32.totalorder %s33, 1
      %p325 = por %p323, %p324
      %p327 = scmp.ne.s32.totalorder %s312, %s326
      %p328 = scmp.eq.s32.totalorder %s33, 0
      %p329 = por %p327, %p328
      %s331 = sadd.s32 %s330, 1
      %p334 = scmp.eq.s32.totalorder %s27, 1
      %p335 = scmp.ne.s32.totalorder %s330, %s332
      %p336 = scmp.eq.s32.totalorder %s27, 0
      %p337 = por %p335, %p336
      %p338 = scmp.ne.s32.totalorder %s330, %s332
      %p339 = scmp.eq.s32.totalorder %s32, 1
      %p340 = por %p338, %p339
      %p341 = scmp.ne.s32.totalorder %s332, %s333
      %p342 = scmp.eq.s32.totalorder %s32, 0
      %p343 = por %p341, %p342
      %p344 = scmp.ne.s32.totalorder %s332, %s333
      %p345 = scmp.eq.s32.totalorder %s33, 1
      %p346 = por %p344, %p345
      %p348 = scmp.ne.s32.totalorder %s333, %s347
      %p349 = scmp.eq.s32.totalorder %s33, 0
      %p350 = por %p348, %p349
      %s352 = sadd.s32 %s351, 1
      %p355 = scmp.eq.s32.totalorder %s27, 1
      %p356 = scmp.ne.s32.totalorder %s351, %s353
      %p357 = scmp.eq.s32.totalorder %s27, 0
      %p358 = por %p356, %p357
      %p359 = scmp.ne.s32.totalorder %s351, %s353
      %p360 = scmp.eq.s32.totalorder %s32, 1
      %p361 = por %p359, %p360
      %p362 = scmp.ne.s32.totalorder %s353, %s354
      %p363 = scmp.eq.s32.totalorder %s32, 0
      %p364 = por %p362, %p363
      %p365 = scmp.ne.s32.totalorder %s353, %s354
      %p366 = scmp.eq.s32.totalorder %s33, 1
      %p367 = por %p365, %p366
      %p369 = scmp.ne.s32.totalorder %s354, %s368
      %p370 = scmp.eq.s32.totalorder %s33, 0
      %p371 = por %p369, %p370
      %s373 = sadd.s32 %s372, 1
      %p376 = scmp.eq.s32.totalorder %s27, 1
      %p377 = scmp.ne.s32.totalorder %s372, %s374
      %p378 = scmp.eq.s32.totalorder %s27, 0
      %p379 = por %p377, %p378
      %p380 = scmp.ne.s32.totalorder %s372, %s374
      %p381 = scmp.eq.s32.totalorder %s32, 1
      %p382 = por %p380, %p381
      %p383 = scmp.ne.s32.totalorder %s374, %s375
      %p384 = scmp.eq.s32.totalorder %s32, 0
      %p385 = por %p383, %p384
      %p386 = scmp.ne.s32.totalorder %s374, %s375
      %p387 = scmp.eq.s32.totalorder %s33, 1
      %p388 = por %p386, %p387
      %p390 = scmp.ne.s32.totalorder %s375, %s389
      %p391 = scmp.eq.s32.totalorder %s33, 0
      %p392 = por %p390, %p391
      %s393 = ssub.s32 %s34, %s46
      %s394 = ssub.s32 %s35, %s42
      %s395 = sor.u32 %s393, %s394
      %p396 = scmp.eq.s32.totalorder %s395, 0
      %s398 = sadd.s32 %s397, 1
      %s399 = scalar_select %p396, %s397, %s398
      %p402 = pneg %p396
      %p403 = scmp.eq.s32.totalorder %s27, 1
      %p404 = por %p402, %p403
      %p405 = scmp.ne.s32.totalorder %s397, %s400
      %p406 = scmp.eq.s32.totalorder %s27, 0
      %p407 = por %p405, %p406
      %p408 = scmp.ne.s32.totalorder %s397, %s400
      %p409 = scmp.eq.s32.totalorder %s32, 1
      %p410 = por %p408, %p409
      %p411 = scmp.ne.s32.totalorder %s400, %s401
      %p412 = scmp.eq.s32.totalorder %s32, 0
      %p413 = por %p411, %p412
      %p414 = scmp.ne.s32.totalorder %s400, %s401
      %p415 = scmp.eq.s32.totalorder %s33, 1
      %p416 = por %p414, %p415
      %p418 = scmp.ne.s32.totalorder %s401, %s417
      %p419 = scmp.eq.s32.totalorder %s33, 0
      %p420 = por %p418, %p419
      %p421 = scmp.le.s32.totalorder 1, %s27
      %p422 = scmp.lt.s32.totalorder %s27, 3
      %p423 = pnand %p421, %p422
      %p424 = pneg %p423
      // Predicated region
      $region9: #{tpu_custom_call.1} parent=5 // pred_check
        _
      $region10: #{tpu_custom_call.1} parent=5 // pred_check_branch
        %426 = sbr.rel (%p423) target = $region12
      $region11: #{tpu_custom_call.1} parent=5 // pred_region
        %s427 = ssub.s32 %s27, 1
        // Predicated region
        $region13: #{tpu_custom_call.1} parent=11 // pred_check
          %p428 = pneg %p112
        $region14: #{tpu_custom_call.1} parent=11 // pred_check_branch
          %430 = sbr.rel (%p428) target = $region16
        $region15: #{tpu_custom_call.1} parent=11 // pred_region
          _
        $region16: #{tpu_custom_call.1} parent=11 // pred_fallthru
          _
        // Predicated region
        $region17: #{tpu_custom_call.1} parent=11 // pred_check
          %p431 = pneg %p133
        $region18: #{tpu_custom_call.1} parent=11 // pred_check_branch
          %433 = sbr.rel (%p431) target = $region20
        $region19: #{tpu_custom_call.1} parent=11 // pred_region
          _
        $region20: #{tpu_custom_call.1} parent=11 // pred_fallthru
          _
        // Predicated region
        $region21: #{tpu_custom_call.1} parent=11 // pred_check
          %p434 = pneg %p154
        $region22: #{tpu_custom_call.1} parent=11 // pred_check_branch
          %436 = sbr.rel (%p434) target = $region24
        $region23: #{tpu_custom_call.1} parent=11 // pred_region
          %s438 = ssub.s32 256, 256
          %439 = vsyncadd [#allocation3], %s438
          %s440 = sshll.u32 [#allocation2], 4
          %s441 = int_to_ptr.vmem [resolvable:$true] %s440
          %446 = dma.hbm_to_vmem [thread:$0]  %s4, 256, %s441, [#allocation3], 64, 64, 4
        $region24: #{tpu_custom_call.1} parent=11 // pred_fallthru
          _
        // Predicated region
        $region25: #{tpu_custom_call.1} parent=11 // pred_check
          %p447 = pneg %p175
        $region26: #{tpu_custom_call.1} parent=11 // pred_check_branch
          %449 = sbr.rel (%p447) target = $region28
        $region27: #{tpu_custom_call.1} parent=11 // pred_region
          _
        $region28: #{tpu_custom_call.1} parent=11 // pred_fallthru
          _
        // Predicated region
        $region29: #{tpu_custom_call.1} parent=11 // pred_check
          %p450 = pneg %p196
        $region30: #{tpu_custom_call.1} parent=11 // pred_check_branch
          %452 = sbr.rel (%p450) target = $region32
        $region31: #{tpu_custom_call.1} parent=11 // pred_region
          %s454 = ssub.s32 256, 256
          %455 = vsyncadd [#allocation6], %s454
          %s456 = sshll.u32 [#allocation5], 4
          %s457 = int_to_ptr.vmem [resolvable:$true] %s456
          %462 = dma.hbm_to_vmem [thread:$0]  %s6, 256, %s457, [#allocation6], 64, 64, 4
        $region32: #{tpu_custom_call.1} parent=11 // pred_fallthru
          _
        // Predicated region
        $region33: #{tpu_custom_call.1} parent=11 // pred_check
          %p463 = pneg %p217
        $region34: #{tpu_custom_call.1} parent=11 // pred_check_branch
          %465 = sbr.rel (%p463) target = $region36
        $region35: #{tpu_custom_call.1} parent=11 // pred_region
          _
        $region36: #{tpu_custom_call.1} parent=11 // pred_fallthru
          _
        // Predicated region
        $region37: #{tpu_custom_call.1} parent=11 // pred_check
          %p466 = pneg %p238
        $region38: #{tpu_custom_call.1} parent=11 // pred_check_branch
          %468 = sbr.rel (%p466) target = $region40
        $region39: #{tpu_custom_call.1} parent=11 // pred_region
          _
        $region40: #{tpu_custom_call.1} parent=11 // pred_fallthru
          _
        // Predicated region
        $region41: #{tpu_custom_call.1} parent=11 // pred_check
          %p469 = pneg %p259
        $region42: #{tpu_custom_call.1} parent=11 // pred_check_branch
          %471 = sbr.rel (%p469) target = $region44
        $region43: #{tpu_custom_call.1} parent=11 // pred_region
          _
        $region44: #{tpu_custom_call.1} parent=11 // pred_fallthru
          _
        // Predicated region
        $region45: #{tpu_custom_call.1} parent=11 // pred_check
          %p472 = pneg %p280
        $region46: #{tpu_custom_call.1} parent=11 // pred_check_branch
          %474 = sbr.rel (%p472) target = $region48
        $region47: #{tpu_custom_call.1} parent=11 // pred_region
          _
        $region48: #{tpu_custom_call.1} parent=11 // pred_fallthru
          _
        // Predicated region
        $region49: #{tpu_custom_call.1} parent=11 // pred_check
          %p475 = pneg %p301
        $region50: #{tpu_custom_call.1} parent=11 // pred_check_branch
          %477 = sbr.rel (%p475) target = $region52
        $region51: #{tpu_custom_call.1} parent=11 // pred_region
          _
        $region52: #{tpu_custom_call.1} parent=11 // pred_fallthru
          _
        // Predicated region
        $region53: #{tpu_custom_call.1} parent=11 // pred_check
          %p478 = pneg %p322
        $region54: #{tpu_custom_call.1} parent=11 // pred_check_branch
          %480 = sbr.rel (%p478) target = $region56
        $region55: #{tpu_custom_call.1} parent=11 // pred_region
          _
        $region56: #{tpu_custom_call.1} parent=11 // pred_fallthru
          _
        // Predicated region
        $region57: #{tpu_custom_call.1} parent=11 // pred_check
          %p481 = pneg %p343
        $region58: #{tpu_custom_call.1} parent=11 // pred_check_branch
          %483 = sbr.rel (%p481) target = $region60
        $region59: #{tpu_custom_call.1} parent=11 // pred_region
          _
        $region60: #{tpu_custom_call.1} parent=11 // pred_fallthru
          _
        // Predicated region
        $region61: #{tpu_custom_call.1} parent=11 // pred_check
          %p484 = pneg %p364
        $region62: #{tpu_custom_call.1} parent=11 // pred_check_branch
          %486 = sbr.rel (%p484) target = $region64
        $region63: #{tpu_custom_call.1} parent=11 // pred_region
          _
        $region64: #{tpu_custom_call.1} parent=11 // pred_fallthru
          _
        // Predicated region
        $region65: #{tpu_custom_call.1} parent=11 // pred_check
          %p487 = pneg %p385
        $region66: #{tpu_custom_call.1} parent=11 // pred_check_branch
          %489 = sbr.rel (%p487) target = $region68
        $region67: #{tpu_custom_call.1} parent=11 // pred_region
          _
        $region68: #{tpu_custom_call.1} parent=11 // pred_fallthru
          _
      $region12: #{tpu_custom_call.1} parent=5 // pred_fallthru
        _
      %p490 = scmp.lt.s32.totalorder %s27, 2
      // Predicated region
      $region69: #{tpu_custom_call.1} parent=5 // pred_check
        %p491 = pneg %p490
      $region70: #{tpu_custom_call.1} parent=5 // pred_check_branch
        %493 = sbr.rel (%p491) target = $region72
      $region71: #{tpu_custom_call.1} parent=5 // pred_region
        // Predicated region
        $region73: #{tpu_custom_call.1} parent=71 // pred_check
          %p494 = pneg %p59
        $region74: #{tpu_custom_call.1} parent=71 // pred_check_branch
          %496 = sbr.rel (%p494) target = $region76
        $region75: #{tpu_custom_call.1} parent=71 // pred_region
          %p497 = scmp.lt.s32.totalorder %s34, 1
          %s498 = scalar_select %p497, %s34, 1
          %s499 = smul.addr %s498, 8
          %s500 = scalar_lea.vmem %s0, %s499
        $region76: #{tpu_custom_call.1} parent=71 // pred_fallthru
          _
        // Predicated region
        $region77: #{tpu_custom_call.1} parent=71 // pred_check
          %p501 = pneg %p85
        $region78: #{tpu_custom_call.1} parent=71 // pred_check_branch
          %503 = sbr.rel (%p501) target = $region80
        $region79: #{tpu_custom_call.1} parent=71 // pred_region
          %p504 = scmp.lt.s32.totalorder %s34, 1
          %s505 = scalar_select %p504, %s34, 1
          %s506 = smul.addr %s505, 8
          %s507 = scalar_lea.vmem %s1, %s506
        $region80: #{tpu_custom_call.1} parent=71 // pred_fallthru
          _
      $region72: #{tpu_custom_call.1} parent=5 // pred_fallthru
        _
      %p508 = scmp.le.s32.totalorder 1, %s27
      %p509 = scmp.lt.s32.totalorder %s27, 3
      %p510 = pnand %p508, %p509
      %p511 = pneg %p510
      // Predicated region
      $region81: #{tpu_custom_call.1} parent=5 // pred_check
        _
      $region82: #{tpu_custom_call.1} parent=5 // pred_check_branch
        %513 = sbr.rel (%p510) target = $region84
      $region83: #{tpu_custom_call.1} parent=5 // pred_region
        %s514 = ssub.s32 %s27, 1
        // Predicated region
        $region85: #{tpu_custom_call.1} parent=83 // pred_check
          %p515 = pneg %p154
        $region86: #{tpu_custom_call.1} parent=83 // pred_check_branch
          %517 = sbr.rel (%p515) target = $region88
        $region87: #{tpu_custom_call.1} parent=83 // pred_region
          %518 = dma.done [#allocation3], 256
        $region88: #{tpu_custom_call.1} parent=83 // pred_fallthru
          _
        // Predicated region
        $region89: #{tpu_custom_call.1} parent=83 // pred_check
          %p519 = pneg %p196
        $region90: #{tpu_custom_call.1} parent=83 // pred_check_branch
          %521 = sbr.rel (%p519) target = $region92
        $region91: #{tpu_custom_call.1} parent=83 // pred_region
          %522 = dma.done [#allocation6], 256
        $region92: #{tpu_custom_call.1} parent=83 // pred_fallthru
          _
        %p523 = scmp.lt.s32.totalorder %s36, 1
        %s524 = scalar_select %p523, %s36, 1
        %s525 = smul.addr %s524, 8
        %s526 = scalar_lea.vmem %s0, %s525
        %p527 = pneg %p65
        %p528 = pneg %p62
        %p529 = scmp.lt.s32.totalorder %s36, 1
        %s530 = scalar_select %p529, %s36, 1
        %s531 = smul.addr %s530, 8
        %s532 = scalar_lea.vmem %s1, %s531
        %p533 = pneg %p91
        %p534 = pneg %p88
        %p535 = pneg %p112
        %p536 = pneg %p109
        %p537 = pneg %p133
        %p538 = pneg %p130
        %p539 = pneg %p154
        %p540 = pneg %p151
        %p541 = pneg %p175
        %p542 = pneg %p172
        %p543 = pneg %p196
        %p544 = pneg %p193
        %p545 = pneg %p217
        %p546 = pneg %p214
        %p547 = pneg %p238
        %p548 = pneg %p235
        %p549 = pneg %p259
        %p550 = pneg %p256
        %p551 = pneg %p280
        %p552 = pneg %p277
        %p553 = pneg %p301
        %p554 = pneg %p298
        %p555 = pneg %p322
        %p556 = pneg %p319
        %p557 = pneg %p343
        %p558 = pneg %p340
        %p559 = pneg %p364
        %p560 = pneg %p361
        %p561 = pneg %p385
        %p562 = pneg %p382
        %p563 = pneg %p413
        %p564 = pneg %p410
        %s565 = sand.u32 %s400, 1
        %s566 = scalar_lea.sflag [#allocation4], %s565
        %s567 = sand.u32 %s400, 1
        %s568 = smul.addr %s567, 8
        %s569 = scalar_lea.vmem [#allocation7], %s568
        %p570 = scmp.lt.s32.totalorder %s36, 1
        %s571 = scalar_select %p570, %s36, 1
        %s572 = smul.addr %s571, 8
        %s573 = scalar_lea.vmem %s0, %s572
        %p574 = scmp.lt.s32.totalorder %s36, 1
        %s575 = scalar_select %p574, %s36, 1
        %s576 = smul.addr %s575, 8
        %s577 = scalar_lea.vmem %s1, %s576
        %v579 = vld [vmem:[%s573] sm:$0xff]
        %v580 = vld [vmem:[%s577] sm:$0xff]
        %v581 = vadd.f32 %v579, %v580
        %v582 = vld [vmem:[%s2] sm:$0xf]
        %v583 = vld [vmem:[%s2 + $0x4] sm:$0xf]
        %v584 = vld [vmem:[%s2 + $0x8] sm:$0xf]
        %v585 = vld [vmem:[%s2 + $0xc] sm:$0xf]
        %v586 = vld [vmem:[%s3] sm:$0x1]
        %v587 = vpack.c.bf16 %v581, %v581
        %v589 = vlaneseq
        %v590 = vshrl.u32 %v589, 7
        %v591 = vsub.s32 0, %v590
        %v592 = vrot.slane %v586, %v591
        %v598 = vunpack.c.l.b16 %v582
        %v599 = vunpack.c.l.b16 %v583
        %v600 = vunpack.c.l.b16 %v584
        %v601 = vunpack.c.l.b16 %v585
        %v602 = vpack.c.b16 %v599, %v598
        %v603 = vpack.c.b16 %v601, %v600
        %vm606 = vcmask 261120
        %v608 = vsel %vm606, %v587, 0
        %610 = vmatprep.subr.bf16.mxu0 0
        %611 = vmatpush1.bf16.msra.mxu0 0
        %612 = vmatprep.subr.bf16.mxu0 0
        %613 = vmatpush1.bf16.msra.mxu0 0
        %614 = vmatprep.subr.bf16.mxu0 0
        %615 = vmatpush1.bf16.msra.mxu0 0
        %616 = vmatprep.subr.bf16.mxu0 0
        %617 = vmatpush1.bf16.msra.mxu0 0
        %618 = vmatprep.subr.bf16.mxu0 0
        %619 = vmatpush1.bf16.msra.mxu0 0
        %620 = vmatprep.subr.bf16.mxu0 0
        %621 = vmatpush1.bf16.msra.mxu0 0
        %622 = vmatprep.subr.bf16.mxu0 0
        %623 = vmatpush1.bf16.msra.mxu0 %v603
        %624 = vmatprep.subr.bf16.mxu0 0
        %625 = vmatpush1.bf16.msra.mxu0 %v602
        %626 = vmatprep.subr.bf16.mxu0 0
        %627 = vmatpush2.bf16.msra.mxu0 0
        %628 = vmatprep.subr.bf16.mxu0 0
        %629 = vmatpush2.bf16.msra.mxu0 0
        %630 = vmatprep.subr.bf16.mxu0 0
        %631 = vmatpush2.bf16.msra.mxu0 0
        %632 = vmatprep.subr.bf16.mxu0 0
        %633 = vmatpush2.bf16.msra.mxu0 0
        %634 = vmatprep.subr.bf16.mxu0 0
        %635 = vmatpush2.bf16.msra.mxu0 0
        %636 = vmatprep.subr.bf16.mxu0 0
        %637 = vmatpush2.bf16.msra.mxu0 0
        %638 = vmatprep.subr.bf16.mxu0 0
        %639 = vmatpush2.bf16.msra.mxu0 0
        %640 = vmatprep.subr.bf16.mxu0 0
        %641 = vmatpush2.bf16.msra.mxu0 0
        %642 = vmatprep.mubr.bf16.mxu0 0
        %643 = vmatmul.mubr.bf16.gmra.mxu0 %v608
        %v644 = vpop.f32.mrf.mxu0
        %v645 = vadd.f32 %v592, %v644
        %v646 = vpop.f32.mrf.mxu0
        %v647 = vpop.f32.mrf.mxu0
        %v648 = vpop.f32.mrf.mxu0
        %649 = vdwg.mxu0
        %v650 = vpack.c.bf16 %v579, %v579
        %651 = vrot.lane.b32.xlu0 %v602, 64
        %v652 = vpop.permute.xlu0 %651
        %653 = vrot.lane.b32.xlu0 %v603, 64
        %v654 = vpop.permute.xlu0 %653
        %657 = vrot.lane.b32.xlu0 %v592, 64
        %v658 = vpop.permute.xlu0 %657
        %v661 = vsel %vm606, %v650, 0
        %663 = vmatprep.subr.bf16.mxu0 0
        %664 = vmatpush1.bf16.msra.mxu0 0
        %665 = vmatprep.subr.bf16.mxu0 0
        %666 = vmatpush1.bf16.msra.mxu0 0
        %667 = vmatprep.subr.bf16.mxu0 0
        %668 = vmatpush1.bf16.msra.mxu0 0
        %669 = vmatprep.subr.bf16.mxu0 0
        %670 = vmatpush1.bf16.msra.mxu0 0
        %671 = vmatprep.subr.bf16.mxu0 0
        %672 = vmatpush1.bf16.msra.mxu0 0
        %673 = vmatprep.subr.bf16.mxu0 0
        %674 = vmatpush1.bf16.msra.mxu0 0
        %675 = vmatprep.subr.bf16.mxu0 0
        %676 = vmatpush1.bf16.msra.mxu0 %v654
        %677 = vmatprep.subr.bf16.mxu0 0
        %678 = vmatpush1.bf16.msra.mxu0 %v652
        %679 = vmatprep.subr.bf16.mxu0 0
        %680 = vmatpush2.bf16.msra.mxu0 0
        %681 = vmatprep.subr.bf16.mxu0 0
        %682 = vmatpush2.bf16.msra.mxu0 0
        %683 = vmatprep.subr.bf16.mxu0 0
        %684 = vmatpush2.bf16.msra.mxu0 0
        %685 = vmatprep.subr.bf16.mxu0 0
        %686 = vmatpush2.bf16.msra.mxu0 0
        %687 = vmatprep.subr.bf16.mxu0 0
        %688 = vmatpush2.bf16.msra.mxu0 0
        %689 = vmatprep.subr.bf16.mxu0 0
        %690 = vmatpush2.bf16.msra.mxu0 0
        %691 = vmatprep.subr.bf16.mxu0 0
        %692 = vmatpush2.bf16.msra.mxu0 0
        %693 = vmatprep.subr.bf16.mxu0 0
        %694 = vmatpush2.bf16.msra.mxu0 0
        %695 = vmatprep.mubr.bf16.mxu0 0
        %696 = vmatmul.mubr.bf16.gmra.mxu0 %v661
        %v697 = vpop.f32.mrf.mxu0
        %v698 = vadd.f32 %v658, %v697
        %v699 = vpop.f32.mrf.mxu0
        %v700 = vpop.f32.mrf.mxu0
        %v701 = vpop.f32.mrf.mxu0
        %702 = vdwg.mxu0
        %v703 = vmul.f32 %v645, 0.35355338
        %705 = vrot.lane.b32.xlu0 %v703, 120
        %v706 = vpop.permute.xlu0 %705
        %708 = vrot.lane.b32.xlu0 %v703, 112
        %v709 = vpop.permute.xlu0 %708
        %711 = vrot.lane.b32.xlu0 %v703, 104
        %v712 = vpop.permute.xlu0 %711
        %v714 = vcombine.low %v703, %v709
        %v715 = vcombine.high %v703, %v709
        %v717 = vunpack.c.l.s4 1983009808
        %v718 = vunpack.c.0.s8 %v717
        %v719 = vlaneseq
        %v720 = vshrl.u32 %v719, 7
        %v721 = vsub.s32 %v718, %v720
        %v722 = vrot.slane %v714, %v721
        %v724 = vunpack.c.l.s4 1983009808
        %v725 = vunpack.c.0.s8 %v724
        %v726 = vlaneseq
        %v727 = vshrl.u32 %v726, 7
        %v728 = vsub.s32 %v725, %v727
        %v729 = vrot.slane %v715, %v728
        %v730 = vcombine.low %v706, %v712
        %v731 = vcombine.high %v706, %v712
        %v733 = vunpack.c.l.s4 1983009808
        %v734 = vunpack.c.0.s8 %v733
        %v735 = vlaneseq
        %v736 = vshrl.u32 %v735, 7
        %v737 = vsub.s32 %v734, %v736
        %v738 = vrot.slane %v730, %v737
        %v740 = vunpack.c.l.s4 1983009808
        %v741 = vunpack.c.0.s8 %v740
        %v742 = vlaneseq
        %v743 = vshrl.u32 %v742, 7
        %v744 = vsub.s32 %v741, %v743
        %v745 = vrot.slane %v731, %v744
        %v746 = vcombine.low %v722, %v738
        %v747 = vcombine.high %v722, %v738
        %v749 = vunpack.c.l.s4 1934713408
        %v750 = vunpack.c.0.s8 %v749
        %v751 = vlaneseq
        %v752 = vshrl.u32 %v751, 7
        %v753 = vsub.s32 %v750, %v752
        %v754 = vrot.slane %v746, %v753
        %v756 = vunpack.c.l.s4 1934713408
        %v757 = vunpack.c.0.s8 %v756
        %v758 = vlaneseq
        %v759 = vshrl.u32 %v758, 7
        %v760 = vsub.s32 %v757, %v759
        %v761 = vrot.slane %v747, %v760
        %v762 = vcombine.low %v729, %v745
        %v763 = vcombine.high %v729, %v745
        %v765 = vunpack.c.l.s4 1934713408
        %v766 = vunpack.c.0.s8 %v765
        %v767 = vlaneseq
        %v768 = vshrl.u32 %v767, 7
        %v769 = vsub.s32 %v766, %v768
        %v770 = vrot.slane %v762, %v769
        %v772 = vunpack.c.l.s4 1934713408
        %v773 = vunpack.c.0.s8 %v772
        %v774 = vlaneseq
        %v775 = vshrl.u32 %v774, 7
        %v776 = vsub.s32 %v773, %v775
        %v777 = vrot.slane %v763, %v776
        %v778 = vcombine.high %v754, 0.0
        %v779 = vcombine.high %v761, 0.0
        %v780 = vcombine.high %v770, 0.0
        %v781 = vcombine.high %v777, 0.0
        %v782 = vcombine.low %v754, %v761
        %v784 = vunpack.c.l.s4 1983009808
        %v785 = vunpack.c.0.s8 %v784
        %v786 = vlaneseq
        %v787 = vshrl.u32 %v786, 7
        %v788 = vsub.s32 %v785, %v787
        %v789 = vrot.slane %v782, %v788
        %v790 = vcombine.low %v778, %v779
        %v792 = vunpack.c.l.s4 1983009808
        %v793 = vunpack.c.0.s8 %v792
        %v794 = vlaneseq
        %v795 = vshrl.u32 %v794, 7
        %v796 = vsub.s32 %v793, %v795
        %v797 = vrot.slane %v790, %v796
        %v798 = vcombine.low %v770, %v777
        %v800 = vunpack.c.l.s4 1983009808
        %v801 = vunpack.c.0.s8 %v800
        %v802 = vlaneseq
        %v803 = vshrl.u32 %v802, 7
        %v804 = vsub.s32 %v801, %v803
        %v805 = vrot.slane %v798, %v804
        %v806 = vcombine.low %v780, %v781
        %v808 = vunpack.c.l.s4 1983009808
        %v809 = vunpack.c.0.s8 %v808
        %v810 = vlaneseq
        %v811 = vshrl.u32 %v810, 7
        %v812 = vsub.s32 %v809, %v811
        %v813 = vrot.slane %v806, %v812
        %v814 = vcombine.low %v789, %v797
        %v815 = vcombine.high %v789, %v797
        %v817 = vunpack.c.l.s4 1934713408
        %v818 = vunpack.c.0.s8 %v817
        %v819 = vlaneseq
        %v820 = vshrl.u32 %v819, 7
        %v821 = vsub.s32 %v818, %v820
        %v822 = vrot.slane %v814, %v821
        %v824 = vunpack.c.l.s4 1934713408
        %v825 = vunpack.c.0.s8 %v824
        %v826 = vlaneseq
        %v827 = vshrl.u32 %v826, 7
        %v828 = vsub.s32 %v825, %v827
        %v829 = vrot.slane %v815, %v828
        %v830 = vcombine.low %v805, %v813
        %v831 = vcombine.high %v805, %v813
        %v833 = vunpack.c.l.s4 1934713408
        %v834 = vunpack.c.0.s8 %v833
        %v835 = vlaneseq
        %v836 = vshrl.u32 %v835, 7
        %v837 = vsub.s32 %v834, %v836
        %v838 = vrot.slane %v830, %v837
        %v840 = vunpack.c.l.s4 1934713408
        %v841 = vunpack.c.0.s8 %v840
        %v842 = vlaneseq
        %v843 = vshrl.u32 %v842, 7
        %v844 = vsub.s32 %v841, %v843
        %v845 = vrot.slane %v831, %v844
        %v846 = vcombine.low %v822, %v838
        %v847 = vcombine.high %v822, %v838
        %v848 = vcombine.low %v829, %v845
        %v849 = vcombine.high %v829, %v845
        %v850 = vpack.c.bf16 %v846, %v846
        %v851 = vpack.c.bf16 %v847, %v847
        %v852 = vpack.c.bf16 %v848, %v848
        %v853 = vpack.c.bf16 %v849, %v849
        %855 = vrot.lane.b32.xlu0 %v645, 120
        %v856 = vpop.permute.xlu0 %855
        %857 = vrot.lane.b32.xlu0 %v645, 112
        %v858 = vpop.permute.xlu0 %857
        %859 = vrot.lane.b32.xlu0 %v645, 104
        %v860 = vpop.permute.xlu0 %859
        %861 = vrot.lane.b32.xlu0 %v645, 96
        %v862 = vpop.permute.xlu0 %861
        %863 = vrot.lane.b32.xlu0 %v856, 96
        %v864 = vpop.permute.xlu0 %863
        %865 = vrot.lane.b32.xlu0 %v858, 96
        %v866 = vpop.permute.xlu0 %865
        %867 = vrot.lane.b32.xlu0 %v860, 96
        %v868 = vpop.permute.xlu0 %867
        %v873 = vcombine.low %v862, %v866
        %v874 = vcombine.high %v862, %v866
        %v876 = vunpack.c.l.s4 1983009808
        %v877 = vunpack.c.0.s8 %v876
        %v878 = vlaneseq
        %v879 = vshrl.u32 %v878, 7
        %v880 = vsub.s32 %v877, %v879
        %v881 = vrot.slane %v873, %v880
        %v883 = vunpack.c.l.s4 1983009808
        %v884 = vunpack.c.0.s8 %v883
        %v885 = vlaneseq
        %v886 = vshrl.u32 %v885, 7
        %v887 = vsub.s32 %v884, %v886
        %v888 = vrot.slane %v874, %v887
        %v889 = vcombine.low %v864, %v868
        %v890 = vcombine.high %v864, %v868
        %v892 = vunpack.c.l.s4 1983009808
        %v893 = vunpack.c.0.s8 %v892
        %v894 = vlaneseq
        %v895 = vshrl.u32 %v894, 7
        %v896 = vsub.s32 %v893, %v895
        %v897 = vrot.slane %v889, %v896
        %v899 = vunpack.c.l.s4 1983009808
        %v900 = vunpack.c.0.s8 %v899
        %v901 = vlaneseq
        %v902 = vshrl.u32 %v901, 7
        %v903 = vsub.s32 %v900, %v902
        %v904 = vrot.slane %v890, %v903
        %v905 = vcombine.low %v881, %v897
        %v906 = vcombine.high %v881, %v897
        %v908 = vunpack.c.l.s4 1934713408
        %v909 = vunpack.c.0.s8 %v908
        %v910 = vlaneseq
        %v911 = vshrl.u32 %v910, 7
        %v912 = vsub.s32 %v909, %v911
        %v913 = vrot.slane %v905, %v912
        %v915 = vunpack.c.l.s4 1934713408
        %v916 = vunpack.c.0.s8 %v915
        %v917 = vlaneseq
        %v918 = vshrl.u32 %v917, 7
        %v919 = vsub.s32 %v916, %v918
        %v920 = vrot.slane %v906, %v919
        %v921 = vcombine.low %v888, %v904
        %v922 = vcombine.high %v888, %v904
        %v924 = vunpack.c.l.s4 1934713408
        %v925 = vunpack.c.0.s8 %v924
        %v926 = vlaneseq
        %v927 = vshrl.u32 %v926, 7
        %v928 = vsub.s32 %v925, %v927
        %v929 = vrot.slane %v921, %v928
        %v931 = vunpack.c.l.s4 1934713408
        %v932 = vunpack.c.0.s8 %v931
        %v933 = vlaneseq
        %v934 = vshrl.u32 %v933, 7
        %v935 = vsub.s32 %v932, %v934
        %v936 = vrot.slane %v922, %v935
        %v937 = vcombine.high %v913, 0.0
        %v938 = vcombine.high %v920, 0.0
        %v939 = vcombine.high %v929, 0.0
        %v940 = vcombine.high %v936, 0.0
        %v941 = vcombine.low %v913, %v920
        %v943 = vunpack.c.l.s4 1983009808
        %v944 = vunpack.c.0.s8 %v943
        %v945 = vlaneseq
        %v946 = vshrl.u32 %v945, 7
        %v947 = vsub.s32 %v944, %v946
        %v948 = vrot.slane %v941, %v947
        %v949 = vcombine.low %v937, %v938
        %v951 = vunpack.c.l.s4 1983009808
        %v952 = vunpack.c.0.s8 %v951
        %v953 = vlaneseq
        %v954 = vshrl.u32 %v953, 7
        %v955 = vsub.s32 %v952, %v954
        %v956 = vrot.slane %v949, %v955
        %v957 = vcombine.low %v929, %v936
        %v959 = vunpack.c.l.s4 1983009808
        %v960 = vunpack.c.0.s8 %v959
        %v961 = vlaneseq
        %v962 = vshrl.u32 %v961, 7
        %v963 = vsub.s32 %v960, %v962
        %v964 = vrot.slane %v957, %v963
        %v965 = vcombine.low %v939, %v940
        %v967 = vunpack.c.l.s4 1983009808
        %v968 = vunpack.c.0.s8 %v967
        %v969 = vlaneseq
        %v970 = vshrl.u32 %v969, 7
        %v971 = vsub.s32 %v968, %v970
        %v972 = vrot.slane %v965, %v971
        %v973 = vcombine.low %v948, %v956
        %v974 = vcombine.high %v948, %v956
        %v976 = vunpack.c.l.s4 1934713408
        %v977 = vunpack.c.0.s8 %v976
        %v978 = vlaneseq
        %v979 = vshrl.u32 %v978, 7
        %v980 = vsub.s32 %v977, %v979
        %v981 = vrot.slane %v973, %v980
        %v983 = vunpack.c.l.s4 1934713408
        %v984 = vunpack.c.0.s8 %v983
        %v985 = vlaneseq
        %v986 = vshrl.u32 %v985, 7
        %v987 = vsub.s32 %v984, %v986
        %v988 = vrot.slane %v974, %v987
        %v989 = vcombine.low %v964, %v972
        %v990 = vcombine.high %v964, %v972
        %v992 = vunpack.c.l.s4 1934713408
        %v993 = vunpack.c.0.s8 %v992
        %v994 = vlaneseq
        %v995 = vshrl.u32 %v994, 7
        %v996 = vsub.s32 %v993, %v995
        %v997 = vrot.slane %v989, %v996
        %v999 = vunpack.c.l.s4 1934713408
        %v1000 = vunpack.c.0.s8 %v999
        %v1001 = vlaneseq
        %v1002 = vshrl.u32 %v1001, 7
        %v1003 = vsub.s32 %v1000, %v1002
        %v1004 = vrot.slane %v990, %v1003
        %v1005 = vcombine.low %v981, %v997
        %v1006 = vcombine.high %v981, %v997
        %v1007 = vcombine.low %v988, %v1004
        %v1008 = vcombine.high %v988, %v1004
        %v1009 = vpack.c.bf16 %v1005, %v1005
        %v1010 = vpack.c.bf16 %v1006, %v1006
        %v1011 = vpack.c.bf16 %v1007, %v1007
        %v1012 = vpack.c.bf16 %v1008, %v1008
        %1014 = vrot.lane.b32.xlu0 %v698, 120
        %v1015 = vpop.permute.xlu0 %1014
        %1017 = vrot.lane.b32.xlu0 %v698, 112
        %v1018 = vpop.permute.xlu0 %1017
        %1020 = vrot.lane.b32.xlu0 %v698, 104
        %v1021 = vpop.permute.xlu0 %1020
        %v1023 = vcombine.low %v698, %v1018
        %v1024 = vcombine.high %v698, %v1018
        %v1026 = vunpack.c.l.s4 1983009808
        %v1027 = vunpack.c.0.s8 %v1026
        %v1028 = vlaneseq
        %v1029 = vshrl.u32 %v1028, 7
        %v1030 = vsub.s32 %v1027, %v1029
        %v1031 = vrot.slane %v1023, %v1030
        %v1033 = vunpack.c.l.s4 1983009808
        %v1034 = vunpack.c.0.s8 %v1033
        %v1035 = vlaneseq
        %v1036 = vshrl.u32 %v1035, 7
        %v1037 = vsub.s32 %v1034, %v1036
        %v1038 = vrot.slane %v1024, %v1037
        %v1039 = vcombine.low %v1015, %v1021
        %v1040 = vcombine.high %v1015, %v1021
        %v1042 = vunpack.c.l.s4 1983009808
        %v1043 = vunpack.c.0.s8 %v1042
        %v1044 = vlaneseq
        %v1045 = vshrl.u32 %v1044, 7
        %v1046 = vsub.s32 %v1043, %v1045
        %v1047 = vrot.slane %v1039, %v1046
        %v1049 = vunpack.c.l.s4 1983009808
        %v1050 = vunpack.c.0.s8 %v1049
        %v1051 = vlaneseq
        %v1052 = vshrl.u32 %v1051, 7
        %v1053 = vsub.s32 %v1050, %v1052
        %v1054 = vrot.slane %v1040, %v1053
        %v1055 = vcombine.low %v1031, %v1047
        %v1056 = vcombine.high %v1031, %v1047
        %v1058 = vunpack.c.l.s4 1934713408
        %v1059 = vunpack.c.0.s8 %v1058
        %v1060 = vlaneseq
        %v1061 = vshrl.u32 %v1060, 7
        %v1062 = vsub.s32 %v1059, %v1061
        %v1063 = vrot.slane %v1055, %v1062
        %v1065 = vunpack.c.l.s4 1934713408
        %v1066 = vunpack.c.0.s8 %v1065
        %v1067 = vlaneseq
        %v1068 = vshrl.u32 %v1067, 7
        %v1069 = vsub.s32 %v1066, %v1068
        %v1070 = vrot.slane %v1056, %v1069
        %v1071 = vcombine.low %v1038, %v1054
        %v1072 = vcombine.high %v1038, %v1054
        %v1074 = vunpack.c.l.s4 1934713408
        %v1075 = vunpack.c.0.s8 %v1074
        %v1076 = vlaneseq
        %v1077 = vshrl.u32 %v1076, 7
        %v1078 = vsub.s32 %v1075, %v1077
        %v1079 = vrot.slane %v1071, %v1078
        %v1081 = vunpack.c.l.s4 1934713408
        %v1082 = vunpack.c.0.s8 %v1081
        %v1083 = vlaneseq
        %v1084 = vshrl.u32 %v1083, 7
        %v1085 = vsub.s32 %v1082, %v1084
        %v1086 = vrot.slane %v1072, %v1085
        %v1087 = vcombine.high %v1063, 0.0
        %v1088 = vcombine.high %v1070, 0.0
        %v1089 = vcombine.high %v1079, 0.0
        %v1090 = vcombine.high %v1086, 0.0
        %v1091 = vcombine.low %v1063, %v1070
        %v1093 = vunpack.c.l.s4 1983009808
        %v1094 = vunpack.c.0.s8 %v1093
        %v1095 = vlaneseq
        %v1096 = vshrl.u32 %v1095, 7
        %v1097 = vsub.s32 %v1094, %v1096
        %v1098 = vrot.slane %v1091, %v1097
        %v1099 = vcombine.low %v1087, %v1088
        %v1101 = vunpack.c.l.s4 1983009808
        %v1102 = vunpack.c.0.s8 %v1101
        %v1103 = vlaneseq
        %v1104 = vshrl.u32 %v1103, 7
        %v1105 = vsub.s32 %v1102, %v1104
        %v1106 = vrot.slane %v1099, %v1105
        %v1107 = vcombine.low %v1079, %v1086
        %v1109 = vunpack.c.l.s4 1983009808
        %v1110 = vunpack.c.0.s8 %v1109
        %v1111 = vlaneseq
        %v1112 = vshrl.u32 %v1111, 7
        %v1113 = vsub.s32 %v1110, %v1112
        %v1114 = vrot.slane %v1107, %v1113
        %v1115 = vcombine.low %v1089, %v1090
        %v1117 = vunpack.c.l.s4 1983009808
        %v1118 = vunpack.c.0.s8 %v1117
        %v1119 = vlaneseq
        %v1120 = vshrl.u32 %v1119, 7
        %v1121 = vsub.s32 %v1118, %v1120
        %v1122 = vrot.slane %v1115, %v1121
        %v1123 = vcombine.low %v1098, %v1106
        %v1124 = vcombine.high %v1098, %v1106
        %v1126 = vunpack.c.l.s4 1934713408
        %v1127 = vunpack.c.0.s8 %v1126
        %v1128 = vlaneseq
        %v1129 = vshrl.u32 %v1128, 7
        %v1130 = vsub.s32 %v1127, %v1129
        %v1131 = vrot.slane %v1123, %v1130
        %v1133 = vunpack.c.l.s4 1934713408
        %v1134 = vunpack.c.0.s8 %v1133
        %v1135 = vlaneseq
        %v1136 = vshrl.u32 %v1135, 7
        %v1137 = vsub.s32 %v1134, %v1136
        %v1138 = vrot.slane %v1124, %v1137
        %v1139 = vcombine.low %v1114, %v1122
        %v1140 = vcombine.high %v1114, %v1122
        %v1142 = vunpack.c.l.s4 1934713408
        %v1143 = vunpack.c.0.s8 %v1142
        %v1144 = vlaneseq
        %v1145 = vshrl.u32 %v1144, 7
        %v1146 = vsub.s32 %v1143, %v1145
        %v1147 = vrot.slane %v1139, %v1146
        %v1149 = vunpack.c.l.s4 1934713408
        %v1150 = vunpack.c.0.s8 %v1149
        %v1151 = vlaneseq
        %v1152 = vshrl.u32 %v1151, 7
        %v1153 = vsub.s32 %v1150, %v1152
        %v1154 = vrot.slane %v1140, %v1153
        %v1155 = vcombine.low %v1131, %v1147
        %v1156 = vcombine.high %v1131, %v1147
        %v1157 = vcombine.low %v1138, %v1154
        %v1158 = vcombine.high %v1138, %v1154
        %v1159 = vpack.c.bf16 %v1155, %v1155
        %v1160 = vpack.c.bf16 %v1156, %v1156
        %v1161 = vpack.c.bf16 %v1157, %v1157
        %v1162 = vpack.c.bf16 %v1158, %v1158
        %vm1163 = vcmask 64512
        %v1165 = vsel %vm1163, %v850, 0
        %v1168 = vsel %vm1163, %v1009, 0
        %1170 = vmatprep.subr.bf16.mxu0 0
        %1171 = vmatpush1.bf16.xpose.msra.mxu0 0
        %1172 = vmatprep.subr.bf16.mxu0 0
        %1173 = vmatpush1.bf16.xpose.msra.mxu0 0
        %1174 = vmatprep.subr.bf16.mxu0 0
        %1175 = vmatpush1.bf16.xpose.msra.mxu0 0
        %1176 = vmatprep.subr.bf16.mxu0 0
        %1177 = vmatpush1.bf16.xpose.msra.mxu0 0
        %1178 = vmatprep.subr.bf16.mxu0 0
        %1179 = vmatpush1.bf16.xpose.msra.mxu0 0
        %1180 = vmatprep.subr.bf16.mxu0 0
        %1181 = vmatpush1.bf16.xpose.msra.mxu0 0
        %1182 = vmatprep.subr.bf16.mxu0 0
        %1183 = vmatpush1.bf16.xpose.msra.mxu0 0
        %1184 = vmatprep.subr.bf16.mxu0 0
        %1185 = vmatpush1.bf16.xpose.msra.mxu0 %v1168
        %1186 = vmatprep.subr.bf16.mxu0 0
        %1187 = vmatpush2.bf16.xpose.msra.mxu0 0
        %1188 = vmatprep.subr.bf16.mxu0 0
        %1189 = vmatpush2.bf16.xpose.msra.mxu0 0
        %1190 = vmatprep.subr.bf16.mxu0 0
        %1191 = vmatpush2.bf16.xpose.msra.mxu0 0
        %1192 = vmatprep.subr.bf16.mxu0 0
        %1193 = vmatpush2.bf16.xpose.msra.mxu0 0
        %1194 = vmatprep.subr.bf16.mxu0 0
        %1195 = vmatpush2.bf16.xpose.msra.mxu0 0
        %1196 = vmatprep.subr.bf16.mxu0 0
        %1197 = vmatpush2.bf16.xpose.msra.mxu0 0
        %1198 = vmatprep.subr.bf16.mxu0 0
        %1199 = vmatpush2.bf16.xpose.msra.mxu0 0
        %1200 = vmatprep.subr.bf16.mxu0 0
        %1201 = vmatpush2.bf16.xpose.msra.mxu0 0
        %1202 = vmatprep.mubr.bf16.mxu0 0
        %1203 = vmatmul.mubr.bf16.gmra.mxu0 %v1165
        %v1204 = vpop.f32.mrf.mxu0
        %v1205 = vadd.f32 0.0, %v1204
        %v1206 = vpop.f32.mrf.mxu0
        %v1207 = vpop.f32.mrf.mxu0
        %v1208 = vpop.f32.mrf.mxu0
        %1209 = vdwg.mxu0
        %v1211 = vsel %vm1163, %v851, 0
        %v1214 = vsel %vm1163, %v1010, 0
        %1216 = vmatprep.subr.bf16.mxu0 0
        %1217 = vmatpush1.bf16.xpose.msra.mxu0 0
        %1218 = vmatprep.subr.bf16.mxu0 0
        %1219 = vmatpush1.bf16.xpose.msra.mxu0 0
        %1220 = vmatprep.subr.bf16.mxu0 0
        %1221 = vmatpush1.bf16.xpose.msra.mxu0 0
        %1222 = vmatprep.subr.bf16.mxu0 0
        %1223 = vmatpush1.bf16.xpose.msra.mxu0 0
        %1224 = vmatprep.subr.bf16.mxu0 0
        %1225 = vmatpush1.bf16.xpose.msra.mxu0 0
        %1226 = vmatprep.subr.bf16.mxu0 0
        %1227 = vmatpush1.bf16.xpose.msra.mxu0 0
        %1228 = vmatprep.subr.bf16.mxu0 0
        %1229 = vmatpush1.bf16.xpose.msra.mxu0 0
        %1230 = vmatprep.subr.bf16.mxu0 0
        %1231 = vmatpush1.bf16.xpose.msra.mxu0 %v1214
        %1232 = vmatprep.subr.bf16.mxu0 0
        %1233 = vmatpush2.bf16.xpose.msra.mxu0 0
        %1234 = vmatprep.subr.bf16.mxu0 0
        %1235 = vmatpush2.bf16.xpose.msra.mxu0 0
        %1236 = vmatprep.subr.bf16.mxu0 0
        %1237 = vmatpush2.bf16.xpose.msra.mxu0 0
        %1238 = vmatprep.subr.bf16.mxu0 0
        %1239 = vmatpush2.bf16.xpose.msra.mxu0 0
        %1240 = vmatprep.subr.bf16.mxu0 0
        %1241 = vmatpush2.bf16.xpose.msra.mxu0 0
        %1242 = vmatprep.subr.bf16.mxu0 0
        %1243 = vmatpush2.bf16.xpose.msra.mxu0 0
        %1244 = vmatprep.subr.bf16.mxu0 0
        %1245 = vmatpush2.bf16.xpose.msra.mxu0 0
        %1246 = vmatprep.subr.bf16.mxu0 0
        %1247 = vmatpush2.bf16.xpose.msra.mxu0 0
        %1248 = vmatprep.mubr.bf16.mxu0 0
        %1249 = vmatmul.mubr.bf16.gmra.mxu0 %v1211
        %v1250 = vpop.f32.mrf.mxu0
        %v1251 = vadd.f32 0.0, %v1250
        %v1252 = vpop.f32.mrf.mxu0
        %v1253 = vpop.f32.mrf.mxu0
        %v1254 = vpop.f32.mrf.mxu0
        %1255 = vdwg.mxu0
        %v1257 = vsel %vm1163, %v852, 0
        %v1260 = vsel %vm1163, %v1011, 0
        %1262 = vmatprep.subr.bf16.mxu0 0
        %1263 = vmatpush1.bf16.xpose.msra.mxu0 0
        %1264 = vmatprep.subr.bf16.mxu0 0
        %1265 = vmatpush1.bf16.xpose.msra.mxu0 0
        %1266 = vmatprep.subr.bf16.mxu0 0
        %1267 = vmatpush1.bf16.xpose.msra.mxu0 0
        %1268 = vmatprep.subr.bf16.mxu0 0
        %1269 = vmatpush1.bf16.xpose.msra.mxu0 0
        %1270 = vmatprep.subr.bf16.mxu0 0
        %1271 = vmatpush1.bf16.xpose.msra.mxu0 0
        %1272 = vmatprep.subr.bf16.mxu0 0
        %1273 = vmatpush1.bf16.xpose.msra.mxu0 0
        %1274 = vmatprep.subr.bf16.mxu0 0
        %1275 = vmatpush1.bf16.xpose.msra.mxu0 0
        %1276 = vmatprep.subr.bf16.mxu0 0
        %1277 = vmatpush1.bf16.xpose.msra.mxu0 %v1260
        %1278 = vmatprep.subr.bf16.mxu0 0
        %1279 = vmatpush2.bf16.xpose.msra.mxu0 0
        %1280 = vmatprep.subr.bf16.mxu0 0
        %1281 = vmatpush2.bf16.xpose.msra.mxu0 0
        %1282 = vmatprep.subr.bf16.mxu0 0
        %1283 = vmatpush2.bf16.xpose.msra.mxu0 0
        %1284 = vmatprep.subr.bf16.mxu0 0
        %1285 = vmatpush2.bf16.xpose.msra.mxu0 0
        %1286 = vmatprep.subr.bf16.mxu0 0
        %1287 = vmatpush2.bf16.xpose.msra.mxu0 0
        %1288 = vmatprep.subr.bf16.mxu0 0
        %1289 = vmatpush2.bf16.xpose.msra.mxu0 0
        %1290 = vmatprep.subr.bf16.mxu0 0
        %1291 = vmatpush2.bf16.xpose.msra.mxu0 0
        %1292 = vmatprep.subr.bf16.mxu0 0
        %1293 = vmatpush2.bf16.xpose.msra.mxu0 0
        %1294 = vmatprep.mubr.bf16.mxu0 0
        %1295 = vmatmul.mubr.bf16.gmra.mxu0 %v1257
        %v1296 = vpop.f32.mrf.mxu0
        %v1297 = vadd.f32 0.0, %v1296
        %v1298 = vpop.f32.mrf.mxu0
        %v1299 = vpop.f32.mrf.mxu0
        %v1300 = vpop.f32.mrf.mxu0
        %1301 = vdwg.mxu0
        %v1303 = vsel %vm1163, %v853, 0
        %v1306 = vsel %vm1163, %v1012, 0
        %1308 = vmatprep.subr.bf16.mxu0 0
        %1309 = vmatpush1.bf16.xpose.msra.mxu0 0
        %1310 = vmatprep.subr.bf16.mxu0 0
        %1311 = vmatpush1.bf16.xpose.msra.mxu0 0
        %1312 = vmatprep.subr.bf16.mxu0 0
        %1313 = vmatpush1.bf16.xpose.msra.mxu0 0
        %1314 = vmatprep.subr.bf16.mxu0 0
        %1315 = vmatpush1.bf16.xpose.msra.mxu0 0
        %1316 = vmatprep.subr.bf16.mxu0 0
        %1317 = vmatpush1.bf16.xpose.msra.mxu0 0
        %1318 = vmatprep.subr.bf16.mxu0 0
        %1319 = vmatpush1.bf16.xpose.msra.mxu0 0
        %1320 = vmatprep.subr.bf16.mxu0 0
        %1321 = vmatpush1.bf16.xpose.msra.mxu0 0
        %1322 = vmatprep.subr.bf16.mxu0 0
        %1323 = vmatpush1.bf16.xpose.msra.mxu0 %v1306
        %1324 = vmatprep.subr.bf16.mxu0 0
        %1325 = vmatpush2.bf16.xpose.msra.mxu0 0
        %1326 = vmatprep.subr.bf16.mxu0 0
        %1327 = vmatpush2.bf16.xpose.msra.mxu0 0
        %1328 = vmatprep.subr.bf16.mxu0 0
        %1329 = vmatpush2.bf16.xpose.msra.mxu0 0
        %1330 = vmatprep.subr.bf16.mxu0 0
        %1331 = vmatpush2.bf16.xpose.msra.mxu0 0
        %1332 = vmatprep.subr.bf16.mxu0 0
        %1333 = vmatpush2.bf16.xpose.msra.mxu0 0
        %1334 = vmatprep.subr.bf16.mxu0 0
        %1335 = vmatpush2.bf16.xpose.msra.mxu0 0
        %1336 = vmatprep.subr.bf16.mxu0 0
        %1337 = vmatpush2.bf16.xpose.msra.mxu0 0
        %1338 = vmatprep.subr.bf16.mxu0 0
        %1339 = vmatpush2.bf16.xpose.msra.mxu0 0
        %1340 = vmatprep.mubr.bf16.mxu0 0
        %1341 = vmatmul.mubr.bf16.gmra.mxu0 %v1303
        %v1342 = vpop.f32.mrf.mxu0
        %v1343 = vadd.f32 0.0, %v1342
        %v1344 = vpop.f32.mrf.mxu0
        %v1345 = vpop.f32.mrf.mxu0
        %v1346 = vpop.f32.mrf.mxu0
        %1347 = vdwg.mxu0
        %v1348 = vsel %vm1163, %v1205, -inf
        %1349 = vmax.xlane.f32.xlu0 %v1348
        %v1350 = vpop.xlane.xlu0 %1349
        %v1351 = vsel %vm1163, %v1251, -inf
        %1352 = vmax.xlane.f32.xlu0 %v1351
        %v1353 = vpop.xlane.xlu0 %1352
        %v1354 = vsel %vm1163, %v1297, -inf
        %1355 = vmax.xlane.f32.xlu0 %v1354
        %v1356 = vpop.xlane.xlu0 %1355
        %v1357 = vsel %vm1163, %v1343, -inf
        %1358 = vmax.xlane.f32.xlu0 %v1357
        %v1359 = vpop.xlane.xlu0 %1358
        %v1360 = vsub.f32 %v1205, %v1350
        %v1361 = vsub.f32 %v1251, %v1353
        %v1362 = vsub.f32 %v1297, %v1356
        %v1363 = vsub.f32 %v1343, %v1359
        %v1364 = vmul.f32 %v1360, 1.442695
        %v1365 = vpow.pop %v1364
        %v1366 = vmul.f32 %v1361, 1.442695
        %v1367 = vpow.pop %v1366
        %v1368 = vmul.f32 %v1362, 1.442695
        %v1369 = vpow.pop %v1368
        %v1370 = vmul.f32 %v1363, 1.442695
        %v1371 = vpow.pop %v1370
        %v1372 = vsel %vm1163, %v1365, 0.0
        %1373 = vadd.xlane.f32.xlu0 %v1372
        %v1374 = vpop.xlane.xlu0 %1373
        %v1375 = vsel %vm1163, %v1367, 0.0
        %1376 = vadd.xlane.f32.xlu0 %v1375
        %v1377 = vpop.xlane.xlu0 %1376
        %v1378 = vsel %vm1163, %v1369, 0.0
        %1379 = vadd.xlane.f32.xlu0 %v1378
        %v1380 = vpop.xlane.xlu0 %1379
        %v1381 = vsel %vm1163, %v1371, 0.0
        %1382 = vadd.xlane.f32.xlu0 %v1381
        %v1383 = vpop.xlane.xlu0 %1382
        %v1384 = vrcp.pop %v1374
        %v1385 = vrcp.pop %v1377
        %v1386 = vrcp.pop %v1380
        %v1387 = vrcp.pop %v1383
        %v1388 = vmul.f32 %v1365, %v1384
        %v1389 = vmul.f32 %v1367, %v1385
        %v1390 = vmul.f32 %v1369, %v1386
        %v1391 = vmul.f32 %v1371, %v1387
        %v1392 = vpack.c.bf16 %v1388, %v1388
        %v1393 = vpack.c.bf16 %v1389, %v1389
        %v1394 = vpack.c.bf16 %v1390, %v1390
        %v1395 = vpack.c.bf16 %v1391, %v1391
        %v1397 = vsel %vm1163, %v1392, 0
        %vm1399 = vcmask 1043456
        %v1401 = vsel %vm1399, %v1159, 0
        %1403 = vmatprep.subr.bf16.mxu0 0
        %1404 = vmatpush1.bf16.msra.mxu0 0
        %1405 = vmatprep.subr.bf16.mxu0 0
        %1406 = vmatpush1.bf16.msra.mxu0 0
        %1407 = vmatprep.subr.bf16.mxu0 0
        %1408 = vmatpush1.bf16.msra.mxu0 0
        %1409 = vmatprep.subr.bf16.mxu0 0
        %1410 = vmatpush1.bf16.msra.mxu0 0
        %1411 = vmatprep.subr.bf16.mxu0 0
        %1412 = vmatpush1.bf16.msra.mxu0 0
        %1413 = vmatprep.subr.bf16.mxu0 0
        %1414 = vmatpush1.bf16.msra.mxu0 0
        %1415 = vmatprep.subr.bf16.mxu0 0
        %1416 = vmatpush1.bf16.msra.mxu0 0
        %1417 = vmatprep.subr.bf16.mxu0 0
        %1418 = vmatpush1.bf16.msra.mxu0 %v1401
        %1419 = vmatprep.subr.bf16.mxu0 0
        %1420 = vmatpush2.bf16.msra.mxu0 0
        %1421 = vmatprep.subr.bf16.mxu0 0
        %1422 = vmatpush2.bf16.msra.mxu0 0
        %1423 = vmatprep.subr.bf16.mxu0 0
        %1424 = vmatpush2.bf16.msra.mxu0 0
        %1425 = vmatprep.subr.bf16.mxu0 0
        %1426 = vmatpush2.bf16.msra.mxu0 0
        %1427 = vmatprep.subr.bf16.mxu0 0
        %1428 = vmatpush2.bf16.msra.mxu0 0
        %1429 = vmatprep.subr.bf16.mxu0 0
        %1430 = vmatpush2.bf16.msra.mxu0 0
        %1431 = vmatprep.subr.bf16.mxu0 0
        %1432 = vmatpush2.bf16.msra.mxu0 0
        %1433 = vmatprep.subr.bf16.mxu0 0
        %1434 = vmatpush2.bf16.msra.mxu0 0
        %1435 = vmatprep.mubr.bf16.mxu0 0
        %1436 = vmatmul.mubr.bf16.gmra.mxu0 %v1397
        %v1437 = vpop.f32.mrf.mxu0
        %v1438 = vadd.f32 0.0, %v1437
        %v1439 = vpop.f32.mrf.mxu0
        %v1440 = vpop.f32.mrf.mxu0
        %v1441 = vpop.f32.mrf.mxu0
        %1442 = vdwg.mxu0
        %v1444 = vsel %vm1163, %v1393, 0
        %v1447 = vsel %vm1399, %v1160, 0
        %1449 = vmatprep.subr.bf16.mxu0 0
        %1450 = vmatpush1.bf16.msra.mxu0 0
        %1451 = vmatprep.subr.bf16.mxu0 0
        %1452 = vmatpush1.bf16.msra.mxu0 0
        %1453 = vmatprep.subr.bf16.mxu0 0
        %1454 = vmatpush1.bf16.msra.mxu0 0
        %1455 = vmatprep.subr.bf16.mxu0 0
        %1456 = vmatpush1.bf16.msra.mxu0 0
        %1457 = vmatprep.subr.bf16.mxu0 0
        %1458 = vmatpush1.bf16.msra.mxu0 0
        %1459 = vmatprep.subr.bf16.mxu0 0
        %1460 = vmatpush1.bf16.msra.mxu0 0
        %1461 = vmatprep.subr.bf16.mxu0 0
        %1462 = vmatpush1.bf16.msra.mxu0 0
        %1463 = vmatprep.subr.bf16.mxu0 0
        %1464 = vmatpush1.bf16.msra.mxu0 %v1447
        %1465 = vmatprep.subr.bf16.mxu0 0
        %1466 = vmatpush2.bf16.msra.mxu0 0
        %1467 = vmatprep.subr.bf16.mxu0 0
        %1468 = vmatpush2.bf16.msra.mxu0 0
        %1469 = vmatprep.subr.bf16.mxu0 0
        %1470 = vmatpush2.bf16.msra.mxu0 0
        %1471 = vmatprep.subr.bf16.mxu0 0
        %1472 = vmatpush2.bf16.msra.mxu0 0
        %1473 = vmatprep.subr.bf16.mxu0 0
        %1474 = vmatpush2.bf16.msra.mxu0 0
        %1475 = vmatprep.subr.bf16.mxu0 0
        %1476 = vmatpush2.bf16.msra.mxu0 0
        %1477 = vmatprep.subr.bf16.mxu0 0
        %1478 = vmatpush2.bf16.msra.mxu0 0
        %1479 = vmatprep.subr.bf16.mxu0 0
        %1480 = vmatpush2.bf16.msra.mxu0 0
        %1481 = vmatprep.mubr.bf16.mxu0 0
        %1482 = vmatmul.mubr.bf16.gmra.mxu0 %v1444
        %v1483 = vpop.f32.mrf.mxu0
        %v1484 = vadd.f32 0.0, %v1483
        %v1485 = vpop.f32.mrf.mxu0
        %v1486 = vpop.f32.mrf.mxu0
        %v1487 = vpop.f32.mrf.mxu0
        %1488 = vdwg.mxu0
        %v1490 = vsel %vm1163, %v1394, 0
        %v1493 = vsel %vm1399, %v1161, 0
        %1495 = vmatprep.subr.bf16.mxu0 0
        %1496 = vmatpush1.bf16.msra.mxu0 0
        %1497 = vmatprep.subr.bf16.mxu0 0
        %1498 = vmatpush1.bf16.msra.mxu0 0
        %1499 = vmatprep.subr.bf16.mxu0 0
        %1500 = vmatpush1.bf16.msra.mxu0 0
        %1501 = vmatprep.subr.bf16.mxu0 0
        %1502 = vmatpush1.bf16.msra.mxu0 0
        %1503 = vmatprep.subr.bf16.mxu0 0
        %1504 = vmatpush1.bf16.msra.mxu0 0
        %1505 = vmatprep.subr.bf16.mxu0 0
        %1506 = vmatpush1.bf16.msra.mxu0 0
        %1507 = vmatprep.subr.bf16.mxu0 0
        %1508 = vmatpush1.bf16.msra.mxu0 0
        %1509 = vmatprep.subr.bf16.mxu0 0
        %1510 = vmatpush1.bf16.msra.mxu0 %v1493
        %1511 = vmatprep.subr.bf16.mxu0 0
        %1512 = vmatpush2.bf16.msra.mxu0 0
        %1513 = vmatprep.subr.bf16.mxu0 0
        %1514 = vmatpush2.bf16.msra.mxu0 0
        %1515 = vmatprep.subr.bf16.mxu0 0
        %1516 = vmatpush2.bf16.msra.mxu0 0
        %1517 = vmatprep.subr.bf16.mxu0 0
        %1518 = vmatpush2.bf16.msra.mxu0 0
        %1519 = vmatprep.subr.bf16.mxu0 0
        %1520 = vmatpush2.bf16.msra.mxu0 0
        %1521 = vmatprep.subr.bf16.mxu0 0
        %1522 = vmatpush2.bf16.msra.mxu0 0
        %1523 = vmatprep.subr.bf16.mxu0 0
        %1524 = vmatpush2.bf16.msra.mxu0 0
        %1525 = vmatprep.subr.bf16.mxu0 0
        %1526 = vmatpush2.bf16.msra.mxu0 0
        %1527 = vmatprep.mubr.bf16.mxu0 0
        %1528 = vmatmul.mubr.bf16.gmra.mxu0 %v1490
        %v1529 = vpop.f32.mrf.mxu0
        %v1530 = vadd.f32 0.0, %v1529
        %v1531 = vpop.f32.mrf.mxu0
        %v1532 = vpop.f32.mrf.mxu0
        %v1533 = vpop.f32.mrf.mxu0
        %1534 = vdwg.mxu0
        %v1536 = vsel %vm1163, %v1395, 0
        %v1539 = vsel %vm1399, %v1162, 0
        %1541 = vmatprep.subr.bf16.mxu0 0
        %1542 = vmatpush1.bf16.msra.mxu0 0
        %1543 = vmatprep.subr.bf16.mxu0 0
        %1544 = vmatpush1.bf16.msra.mxu0 0
        %1545 = vmatprep.subr.bf16.mxu0 0
        %1546 = vmatpush1.bf16.msra.mxu0 0
        %1547 = vmatprep.subr.bf16.mxu0 0
        %1548 = vmatpush1.bf16.msra.mxu0 0
        %1549 = vmatprep.subr.bf16.mxu0 0
        %1550 = vmatpush1.bf16.msra.mxu0 0
        %1551 = vmatprep.subr.bf16.mxu0 0
        %1552 = vmatpush1.bf16.msra.mxu0 0
        %1553 = vmatprep.subr.bf16.mxu0 0
        %1554 = vmatpush1.bf16.msra.mxu0 0
        %1555 = vmatprep.subr.bf16.mxu0 0
        %1556 = vmatpush1.bf16.msra.mxu0 %v1539
        %1557 = vmatprep.subr.bf16.mxu0 0
        %1558 = vmatpush2.bf16.msra.mxu0 0
        %1559 = vmatprep.subr.bf16.mxu0 0
        %1560 = vmatpush2.bf16.msra.mxu0 0
        %1561 = vmatprep.subr.bf16.mxu0 0
        %1562 = vmatpush2.bf16.msra.mxu0 0
        %1563 = vmatprep.subr.bf16.mxu0 0
        %1564 = vmatpush2.bf16.msra.mxu0 0
        %1565 = vmatprep.subr.bf16.mxu0 0
        %1566 = vmatpush2.bf16.msra.mxu0 0
        %1567 = vmatprep.subr.bf16.mxu0 0
        %1568 = vmatpush2.bf16.msra.mxu0 0
        %1569 = vmatprep.subr.bf16.mxu0 0
        %1570 = vmatpush2.bf16.msra.mxu0 0
        %1571 = vmatprep.subr.bf16.mxu0 0
        %1572 = vmatpush2.bf16.msra.mxu0 0
        %1573 = vmatprep.mubr.bf16.mxu0 0
        %1574 = vmatmul.mubr.bf16.gmra.mxu0 %v1536
        %v1575 = vpop.f32.mrf.mxu0
        %v1576 = vadd.f32 0.0, %v1575
        %v1577 = vpop.f32.mrf.mxu0
        %v1578 = vpop.f32.mrf.mxu0
        %v1579 = vpop.f32.mrf.mxu0
        %1580 = vdwg.mxu0
        %v1581 = vcombine.low %v1438, %v1530
        %v1582 = vcombine.high %v1438, %v1530
        %v1584 = vunpack.c.l.s4 1983009808
        %v1585 = vunpack.c.0.s8 %v1584
        %v1586 = vlaneseq
        %v1587 = vshrl.u32 %v1586, 7
        %v1588 = vsub.s32 %v1585, %v1587
        %v1589 = vrot.slane %v1581, %v1588
        %v1591 = vunpack.c.l.s4 1983009808
        %v1592 = vunpack.c.0.s8 %v1591
        %v1593 = vlaneseq
        %v1594 = vshrl.u32 %v1593, 7
        %v1595 = vsub.s32 %v1592, %v1594
        %v1596 = vrot.slane %v1582, %v1595
        %v1597 = vcombine.low %v1484, %v1576
        %v1598 = vcombine.high %v1484, %v1576
        %v1600 = vunpack.c.l.s4 1983009808
        %v1601 = vunpack.c.0.s8 %v1600
        %v1602 = vlaneseq
        %v1603 = vshrl.u32 %v1602, 7
        %v1604 = vsub.s32 %v1601, %v1603
        %v1605 = vrot.slane %v1597, %v1604
        %v1607 = vunpack.c.l.s4 1983009808
        %v1608 = vunpack.c.0.s8 %v1607
        %v1609 = vlaneseq
        %v1610 = vshrl.u32 %v1609, 7
        %v1611 = vsub.s32 %v1608, %v1610
        %v1612 = vrot.slane %v1598, %v1611
        %v1613 = vcombine.low %v1589, %v1605
        %v1614 = vcombine.high %v1589, %v1605
        %v1616 = vunpack.c.l.s4 1934713408
        %v1617 = vunpack.c.0.s8 %v1616
        %v1618 = vlaneseq
        %v1619 = vshrl.u32 %v1618, 7
        %v1620 = vsub.s32 %v1617, %v1619
        %v1621 = vrot.slane %v1613, %v1620
        %v1623 = vunpack.c.l.s4 1934713408
        %v1624 = vunpack.c.0.s8 %v1623
        %v1625 = vlaneseq
        %v1626 = vshrl.u32 %v1625, 7
        %v1627 = vsub.s32 %v1624, %v1626
        %v1628 = vrot.slane %v1614, %v1627
        %v1629 = vcombine.low %v1596, %v1612
        %v1630 = vcombine.high %v1596, %v1612
        %v1632 = vunpack.c.l.s4 1934713408
        %v1633 = vunpack.c.0.s8 %v1632
        %v1634 = vlaneseq
        %v1635 = vshrl.u32 %v1634, 7
        %v1636 = vsub.s32 %v1633, %v1635
        %v1637 = vrot.slane %v1629, %v1636
        %v1639 = vunpack.c.l.s4 1934713408
        %v1640 = vunpack.c.0.s8 %v1639
        %v1641 = vlaneseq
        %v1642 = vshrl.u32 %v1641, 7
        %v1643 = vsub.s32 %v1640, %v1642
        %v1644 = vrot.slane %v1630, %v1643
        %v1645 = vcombine.high %v1621, 0.0
        %v1646 = vcombine.high %v1628, 0.0
        %v1647 = vcombine.high %v1637, 0.0
        %v1648 = vcombine.high %v1644, 0.0
        %v1649 = vcombine.low %v1621, %v1628
        %v1651 = vunpack.c.l.s4 1983009808
        %v1652 = vunpack.c.0.s8 %v1651
        %v1653 = vlaneseq
        %v1654 = vshrl.u32 %v1653, 7
        %v1655 = vsub.s32 %v1652, %v1654
        %v1656 = vrot.slane %v1649, %v1655
        %v1657 = vcombine.low %v1645, %v1646
        %v1659 = vunpack.c.l.s4 1983009808
        %v1660 = vunpack.c.0.s8 %v1659
        %v1661 = vlaneseq
        %v1662 = vshrl.u32 %v1661, 7
        %v1663 = vsub.s32 %v1660, %v1662
        %v1664 = vrot.slane %v1657, %v1663
        %v1665 = vcombine.low %v1637, %v1644
        %v1667 = vunpack.c.l.s4 1983009808
        %v1668 = vunpack.c.0.s8 %v1667
        %v1669 = vlaneseq
        %v1670 = vshrl.u32 %v1669, 7
        %v1671 = vsub.s32 %v1668, %v1670
        %v1672 = vrot.slane %v1665, %v1671
        %v1673 = vcombine.low %v1647, %v1648
        %v1675 = vunpack.c.l.s4 1983009808
        %v1676 = vunpack.c.0.s8 %v1675
        %v1677 = vlaneseq
        %v1678 = vshrl.u32 %v1677, 7
        %v1679 = vsub.s32 %v1676, %v1678
        %v1680 = vrot.slane %v1673, %v1679
        %v1681 = vcombine.low %v1656, %v1664
        %v1682 = vcombine.high %v1656, %v1664
        %v1684 = vunpack.c.l.s4 1934713408
        %v1685 = vunpack.c.0.s8 %v1684
        %v1686 = vlaneseq
        %v1687 = vshrl.u32 %v1686, 7
        %v1688 = vsub.s32 %v1685, %v1687
        %v1689 = vrot.slane %v1681, %v1688
        %v1691 = vunpack.c.l.s4 1934713408
        %v1692 = vunpack.c.0.s8 %v1691
        %v1693 = vlaneseq
        %v1694 = vshrl.u32 %v1693, 7
        %v1695 = vsub.s32 %v1692, %v1694
        %v1696 = vrot.slane %v1682, %v1695
        %v1697 = vcombine.low %v1672, %v1680
        %v1698 = vcombine.high %v1672, %v1680
        %v1700 = vunpack.c.l.s4 1934713408
        %v1701 = vunpack.c.0.s8 %v1700
        %v1702 = vlaneseq
        %v1703 = vshrl.u32 %v1702, 7
        %v1704 = vsub.s32 %v1701, %v1703
        %v1705 = vrot.slane %v1697, %v1704
        %v1707 = vunpack.c.l.s4 1934713408
        %v1708 = vunpack.c.0.s8 %v1707
        %v1709 = vlaneseq
        %v1710 = vshrl.u32 %v1709, 7
        %v1711 = vsub.s32 %v1708, %v1710
        %v1712 = vrot.slane %v1698, %v1711
        %v1713 = vcombine.low %v1689, %v1705
        %v1714 = vcombine.high %v1689, %v1705
        %v1715 = vcombine.low %v1696, %v1712
        %v1716 = vcombine.high %v1696, %v1712
        %1718 = vrot.lane.b32.xlu0 %v1714, 8
        %v1719 = vpop.permute.xlu0 %1718
        %1722 = vrot.lane.b32.xlu0 %v1715, 16
        %v1723 = vpop.permute.xlu0 %1722
        %1726 = vrot.lane.b32.xlu0 %v1716, 24
        %v1727 = vpop.permute.xlu0 %1726
        %v1729 = vsel %vm1163, %v1713, %v1719
        %vm1730 = vcmask 130048
        %v1731 = vsel %vm1730, %v1729, %v1723
        %vm1732 = vcmask 195584
        %v1733 = vsel %vm1732, %v1731, %v1727
        %v1734 = vpack.c.bf16 %v1733, %v1733
        %v1735 = vld [vmem:[#allocation2] sm:$0xf]
        %v1736 = vld [vmem:[#allocation2 + $0x4] sm:$0xf]
        %v1737 = vld [vmem:[#allocation2 + $0x8] sm:$0xf]
        %v1738 = vld [vmem:[#allocation2 + $0xc] sm:$0xf]
        %v1739 = vld [vmem:[%s5] sm:$0x1]
        %v1741 = vlaneseq
        %v1742 = vshrl.u32 %v1741, 7
        %v1743 = vsub.s32 0, %v1742
        %v1744 = vrot.slane %v1739, %v1743
        %v1750 = vunpack.c.l.b16 %v1735
        %v1751 = vunpack.c.l.b16 %v1736
        %v1752 = vunpack.c.l.b16 %v1737
        %v1753 = vunpack.c.l.b16 %v1738
        %v1754 = vpack.c.b16 %v1751, %v1750
        %v1755 = vpack.c.b16 %v1753, %v1752
        %v1759 = vsel %vm606, %v1734, 0
        %1761 = vmatprep.subr.bf16.mxu0 0
        %1762 = vmatpush1.bf16.msra.mxu0 0
        %1763 = vmatprep.subr.bf16.mxu0 0
        %1764 = vmatpush1.bf16.msra.mxu0 0
        %1765 = vmatprep.subr.bf16.mxu0 0
        %1766 = vmatpush1.bf16.msra.mxu0 0
        %1767 = vmatprep.subr.bf16.mxu0 0
        %1768 = vmatpush1.bf16.msra.mxu0 0
        %1769 = vmatprep.subr.bf16.mxu0 0
        %1770 = vmatpush1.bf16.msra.mxu0 0
        %1771 = vmatprep.subr.bf16.mxu0 0
        %1772 = vmatpush1.bf16.msra.mxu0 0
        %1773 = vmatprep.subr.bf16.mxu0 0
        %1774 = vmatpush1.bf16.msra.mxu0 %v1755
        %1775 = vmatprep.subr.bf16.mxu0 0
        %1776 = vmatpush1.bf16.msra.mxu0 %v1754
        %1777 = vmatprep.subr.bf16.mxu0 0
        %1778 = vmatpush2.bf16.msra.mxu0 0
        %1779 = vmatprep.subr.bf16.mxu0 0
        %1780 = vmatpush2.bf16.msra.mxu0 0
        %1781 = vmatprep.subr.bf16.mxu0 0
        %1782 = vmatpush2.bf16.msra.mxu0 0
        %1783 = vmatprep.subr.bf16.mxu0 0
        %1784 = vmatpush2.bf16.msra.mxu0 0
        %1785 = vmatprep.subr.bf16.mxu0 0
        %1786 = vmatpush2.bf16.msra.mxu0 0
        %1787 = vmatprep.subr.bf16.mxu0 0
        %1788 = vmatpush2.bf16.msra.mxu0 0
        %1789 = vmatprep.subr.bf16.mxu0 0
        %1790 = vmatpush2.bf16.msra.mxu0 0
        %1791 = vmatprep.subr.bf16.mxu0 0
        %1792 = vmatpush2.bf16.msra.mxu0 0
        %1793 = vmatprep.mubr.bf16.mxu0 0
        %1794 = vmatmul.mubr.bf16.gmra.mxu0 %v1759
        %v1795 = vpop.f32.mrf.mxu0
        %v1796 = vadd.f32 %v1744, %v1795
        %v1797 = vpop.f32.mrf.mxu0
        %v1798 = vpop.f32.mrf.mxu0
        %v1799 = vpop.f32.mrf.mxu0
        %1800 = vdwg.mxu0
        %v1801 = vadd.f32 %v579, %v1796
        %v1802 = vsel %vm606, %v1801, 0.0
        %1803 = vadd.xlane.f32.xlu0 %v1802
        %v1804 = vpop.xlane.xlu0 %1803
        %v1805 = vmul.f32 %v1804, 0.03125
        %v1806 = vmul.f32 %v1801, %v1801
        %v1807 = vsel %vm606, %v1806, 0.0
        %1808 = vadd.xlane.f32.xlu0 %v1807
        %v1809 = vpop.xlane.xlu0 %1808
        %v1810 = vmul.f32 %v1809, 0.03125
        %v1811 = vmul.f32 %v1805, %v1805
        %v1812 = vsub.f32 %v1810, %v1811
        %v1813 = vsub.f32 %v1801, %v1805
        %v1814 = vadd.f32 %v1812, 1e-05
        %v1815 = vrsqrt.pop %v1814
        %v1816 = vmul.f32 %v1813, %v1815
        %v1817 = vld [vmem:[%s10] sm:$0x1]
        %v1819 = vlaneseq
        %v1820 = vshrl.u32 %v1819, 7
        %v1821 = vsub.s32 0, %v1820
        %v1822 = vrot.slane %v1817, %v1821
        %v1824 = vmul.f32 %v1816, %v1822
        %v1825 = vld [vmem:[%s11] sm:$0x1]
        %v1827 = vlaneseq
        %v1828 = vshrl.u32 %v1827, 7
        %v1829 = vsub.s32 0, %v1828
        %v1830 = vrot.slane %v1825, %v1829
        %v1832 = vadd.f32 %v1824, %v1830
        %v1833 = vpack.c.bf16 %v1832, %v1832
        %v1834 = vld [vmem:[#allocation5] sm:$0xf]
        %v1835 = vld [vmem:[#allocation5 + $0x4] sm:$0xf]
        %v1836 = vld [vmem:[#allocation5 + $0x8] sm:$0xf]
        %v1837 = vld [vmem:[#allocation5 + $0xc] sm:$0xf]
        %v1838 = vld [vmem:[%s7] sm:$0x1]
        %v1840 = vlaneseq
        %v1841 = vshrl.u32 %v1840, 7
        %v1842 = vsub.s32 0, %v1841
        %v1843 = vrot.slane %v1838, %v1842
        %v1849 = vunpack.c.l.b16 %v1834
        %v1850 = vunpack.c.l.b16 %v1835
        %v1851 = vunpack.c.l.b16 %v1836
        %v1852 = vunpack.c.l.b16 %v1837
        %v1853 = vpack.c.b16 %v1850, %v1849
        %v1854 = vpack.c.b16 %v1852, %v1851
        %v1858 = vsel %vm606, %v1833, 0
        %1860 = vmatprep.subr.bf16.mxu0 0
        %1861 = vmatpush1.bf16.msra.mxu0 0
        %1862 = vmatprep.subr.bf16.mxu0 0
        %1863 = vmatpush1.bf16.msra.mxu0 0
        %1864 = vmatprep.subr.bf16.mxu0 0
        %1865 = vmatpush1.bf16.msra.mxu0 0
        %1866 = vmatprep.subr.bf16.mxu0 0
        %1867 = vmatpush1.bf16.msra.mxu0 0
        %1868 = vmatprep.subr.bf16.mxu0 0
        %1869 = vmatpush1.bf16.msra.mxu0 0
        %1870 = vmatprep.subr.bf16.mxu0 0
        %1871 = vmatpush1.bf16.msra.mxu0 0
        %1872 = vmatprep.subr.bf16.mxu0 0
        %1873 = vmatpush1.bf16.msra.mxu0 %v1854
        %1874 = vmatprep.subr.bf16.mxu0 0
        %1875 = vmatpush1.bf16.msra.mxu0 %v1853
        %1876 = vmatprep.subr.bf16.mxu0 0
        %1877 = vmatpush2.bf16.msra.mxu0 0
        %1878 = vmatprep.subr.bf16.mxu0 0
        %1879 = vmatpush2.bf16.msra.mxu0 0
        %1880 = vmatprep.subr.bf16.mxu0 0
        %1881 = vmatpush2.bf16.msra.mxu0 0
        %1882 = vmatprep.subr.bf16.mxu0 0
        %1883 = vmatpush2.bf16.msra.mxu0 0
        %1884 = vmatprep.subr.bf16.mxu0 0
        %1885 = vmatpush2.bf16.msra.mxu0 0
        %1886 = vmatprep.subr.bf16.mxu0 0
        %1887 = vmatpush2.bf16.msra.mxu0 0
        %1888 = vmatprep.subr.bf16.mxu0 0
        %1889 = vmatpush2.bf16.msra.mxu0 0
        %1890 = vmatprep.subr.bf16.mxu0 0
        %1891 = vmatpush2.bf16.msra.mxu0 0
        %1892 = vmatprep.mubr.bf16.mxu0 0
        %1893 = vmatmul.mubr.bf16.gmra.mxu0 %v1858
        %v1894 = vpop.f32.mrf.mxu0
        %v1895 = vadd.f32 %v1843, %v1894
        %v1896 = vpop.f32.mrf.mxu0
        %v1897 = vpop.f32.mrf.mxu0
        %v1898 = vpop.f32.mrf.mxu0
        %1899 = vdwg.mxu0
        %v1900 = vmax.f32 %v1895, 0.0
        %v1901 = vpack.c.bf16 %v1900, %v1900
        %v1902 = vld [vmem:[%s8] sm:$0xf]
        %v1903 = vld [vmem:[%s8 + $0x4] sm:$0xf]
        %v1904 = vld [vmem:[%s8 + $0x8] sm:$0xf]
        %v1905 = vld [vmem:[%s8 + $0xc] sm:$0xf]
        %v1906 = vld [vmem:[%s8 + $0x10] sm:$0xf]
        %v1907 = vld [vmem:[%s8 + $0x14] sm:$0xf]
        %v1908 = vld [vmem:[%s8 + $0x18] sm:$0xf]
        %v1909 = vld [vmem:[%s8 + $0x1c] sm:$0xf]
        %v1910 = vld [vmem:[%s9] sm:$0x1]
        %v1912 = vlaneseq
        %v1913 = vshrl.u32 %v1912, 7
        %v1914 = vsub.s32 0, %v1913
        %v1915 = vrot.slane %v1910, %v1914
        %v1925 = vunpack.c.l.b16 %v1902
        %v1926 = vunpack.c.l.b16 %v1903
        %v1927 = vunpack.c.l.b16 %v1904
        %v1928 = vunpack.c.l.b16 %v1905
        %v1929 = vunpack.c.l.b16 %v1906
        %v1930 = vunpack.c.l.b16 %v1907
        %v1931 = vunpack.c.l.b16 %v1908
        %v1932 = vunpack.c.l.b16 %v1909
        %v1933 = vpack.c.b16 %v1926, %v1925
        %v1934 = vpack.c.b16 %v1928, %v1927
        %v1935 = vpack.c.b16 %v1930, %v1929
        %v1936 = vpack.c.b16 %v1932, %v1931
        %vm1941 = vcmask 523264
        %v1943 = vsel %vm1941, %v1901, 0
        %1945 = vmatprep.subr.bf16.mxu0 0
        %1946 = vmatpush1.bf16.msra.mxu0 0
        %1947 = vmatprep.subr.bf16.mxu0 0
        %1948 = vmatpush1.bf16.msra.mxu0 0
        %1949 = vmatprep.subr.bf16.mxu0 0
        %1950 = vmatpush1.bf16.msra.mxu0 0
        %1951 = vmatprep.subr.bf16.mxu0 0
        %1952 = vmatpush1.bf16.msra.mxu0 0
        %1953 = vmatprep.subr.bf16.mxu0 0
        %1954 = vmatpush1.bf16.msra.mxu0 %v1936
        %1955 = vmatprep.subr.bf16.mxu0 0
        %1956 = vmatpush1.bf16.msra.mxu0 %v1935
        %1957 = vmatprep.subr.bf16.mxu0 0
        %1958 = vmatpush1.bf16.msra.mxu0 %v1934
        %1959 = vmatprep.subr.bf16.mxu0 0
        %1960 = vmatpush1.bf16.msra.mxu0 %v1933
        %1961 = vmatprep.subr.bf16.mxu0 0
        %1962 = vmatpush2.bf16.msra.mxu0 0
        %1963 = vmatprep.subr.bf16.mxu0 0
        %1964 = vmatpush2.bf16.msra.mxu0 0
        %1965 = vmatprep.subr.bf16.mxu0 0
        %1966 = vmatpush2.bf16.msra.mxu0 0
        %1967 = vmatprep.subr.bf16.mxu0 0
        %1968 = vmatpush2.bf16.msra.mxu0 0
        %1969 = vmatprep.subr.bf16.mxu0 0
        %1970 = vmatpush2.bf16.msra.mxu0 0
        %1971 = vmatprep.subr.bf16.mxu0 0
        %1972 = vmatpush2.bf16.msra.mxu0 0
        %1973 = vmatprep.subr.bf16.mxu0 0
        %1974 = vmatpush2.bf16.msra.mxu0 0
        %1975 = vmatprep.subr.bf16.mxu0 0
        %1976 = vmatpush2.bf16.msra.mxu0 0
        %1977 = vmatprep.mubr.bf16.mxu0 0
        %1978 = vmatmul.mubr.bf16.gmra.mxu0 %v1943
        %v1979 = vpop.f32.mrf.mxu0
        %v1980 = vadd.f32 %v1915, %v1979
        %v1981 = vpop.f32.mrf.mxu0
        %v1982 = vpop.f32.mrf.mxu0
        %v1983 = vpop.f32.mrf.mxu0
        %1984 = vdwg.mxu0
        %v1985 = vadd.f32 %v1832, %v1980
        %v1986 = vsel %vm606, %v1985, 0.0
        %1987 = vadd.xlane.f32.xlu0 %v1986
        %v1988 = vpop.xlane.xlu0 %1987
        %v1989 = vmul.f32 %v1988, 0.03125
        %v1990 = vmul.f32 %v1985, %v1985
        %v1991 = vsel %vm606, %v1990, 0.0
        %1992 = vadd.xlane.f32.xlu0 %v1991
        %v1993 = vpop.xlane.xlu0 %1992
        %v1994 = vmul.f32 %v1993, 0.03125
        %v1995 = vmul.f32 %v1989, %v1989
        %v1996 = vsub.f32 %v1994, %v1995
        %v1997 = vsub.f32 %v1985, %v1989
        %v1998 = vadd.f32 %v1996, 1e-05
        %v1999 = vrsqrt.pop %v1998
        %v2000 = vmul.f32 %v1997, %v1999
        %v2001 = vld [vmem:[%s12] sm:$0x1]
        %v2003 = vlaneseq
        %v2004 = vshrl.u32 %v2003, 7
        %v2005 = vsub.s32 0, %v2004
        %v2006 = vrot.slane %v2001, %v2005
        %v2008 = vmul.f32 %v2000, %v2006
        %v2009 = vld [vmem:[%s13] sm:$0x1]
        %v2011 = vlaneseq
        %v2012 = vshrl.u32 %v2011, 7
        %v2013 = vsub.s32 0, %v2012
        %v2014 = vrot.slane %v2009, %v2013
        %v2016 = vadd.f32 %v2008, %v2014
        %2017 = vst.msk [vmem:[%s569] sm:$0xff] %vm606, %v2016
        %s2018 = sand.u32 %s400, 1
        %s2019 = scalar_lea.sflag [#allocation4], %s2018
        %s2020 = sand.u32 %s400, 1
        %s2021 = smul.addr %s2020, 8
        %s2022 = scalar_lea.vmem [#allocation7], %s2021
        // Predicated region
        $region93: #{tpu_custom_call.1} parent=83 // pred_check
          %p2023 = pneg %p410
        $region94: #{tpu_custom_call.1} parent=83 // pred_check_branch
          %2025 = sbr.rel (%p2023) target = $region96
        $region95: #{tpu_custom_call.1} parent=83 // pred_region
          %s2027 = ssub.s32 128, 128
          %2028 = vsyncadd %s2019, %s2027
          %s2029 = sadd.s32 %s37, %s36
          %s2030 = smul.addr %s2029, 128
          %s2031 = scalar_lea.hbm %s16, %s2030
          %s2033 = sshll.u32 %s2022, 4
          %s2034 = int_to_ptr.vmem [resolvable:$true] %s2033
          %2036 = dma.vmem_to_hbm [thread:$0]  %s2034, 128, %s2031, %s2019
        $region96: #{tpu_custom_call.1} parent=83 // pred_fallthru
          _
      $region84: #{tpu_custom_call.1} parent=5 // pred_fallthru
        _
      %p2037 = scmp.le.s32.totalorder 2, %s27
      // Predicated region
      $region97: #{tpu_custom_call.1} parent=5 // pred_check
        %p2038 = pneg %p2037
      $region98: #{tpu_custom_call.1} parent=5 // pred_check_branch
        %2040 = sbr.rel (%p2038) target = $region100
      $region99: #{tpu_custom_call.1} parent=5 // pred_region
        %s2041 = ssub.s32 %s27, 2
        // Predicated region
        $region101: #{tpu_custom_call.1} parent=99 // pred_check
          %p2042 = pneg %p416
        $region102: #{tpu_custom_call.1} parent=99 // pred_check_branch
          %2044 = sbr.rel (%p2042) target = $region104
        $region103: #{tpu_custom_call.1} parent=99 // pred_region
          %s2045 = sand.u32 %s401, 1
          %s2046 = scalar_lea.sflag [#allocation4], %s2045
          %s2047 = sand.u32 %s401, 1
          %s2048 = smul.addr %s2047, 8
          %s2049 = scalar_lea.vmem [#allocation7], %s2048
          %2050 = dma.done %s2046, 128
        $region104: #{tpu_custom_call.1} parent=99 // pred_fallthru
          _
      $region100: #{tpu_custom_call.1} parent=5 // pred_fallthru
        _
    $region6: #{tpu_custom_call.1} parent=1 // loop_footer
      %s31 = sadd.s32 1, %s27
    $region7: #{tpu_custom_call.1} parent=1 // loop_footer_branch
      %26 = sbr.rel target = $region3
    $region8: #{tpu_custom_call.1} parent=1 // loop_exit
      _
    %2051 = vsyncpa [#allocation3], 1
    %s2052 = scalar_lea.sflag [#allocation3], 1
    %2053 = vsyncpa %s2052, 1
    %2054 = vsyncpa [#allocation6], 1
    %2055 = vsyncpa [#allocation4], 1
    %s2056 = scalar_lea.sflag [#allocation4], 1
    %2057 = vsyncpa %s2056, 1

</llo_original>
